<compile_context>
chip_gen: v5e
topology: v5e:2x2
jax: 0.10.0
libtpu: 0.0.40
codegen_flags: <defaults>
</compile_context>

<pallas_src>
import functools

import jax
import jax.numpy as jnp
from jax import lax
from jax.experimental import pallas as pl
from jax.experimental.pallas import tpu as pltpu


# ----------------------------------------------------------------------------
# Parameter preprocessing (wrapper-side glue, not kernel work)
# ----------------------------------------------------------------------------
def _spectral_norm_weight(weight_oihw):
    """PyTorch-style spectral_norm: one power iteration from a deterministic u."""
    cout = weight_oihw.shape[0]
    w_mat = weight_oihw.reshape(cout, -1)
    u = jax.random.normal(jax.random.PRNGKey(1), (cout,), dtype=jnp.float32)
    u = u / (jnp.linalg.norm(u) + 1e-12)
    v = w_mat.T @ u
    v = v / (jnp.linalg.norm(v) + 1e-12)
    u = w_mat @ v
    u = u / (jnp.linalg.norm(u) + 1e-12)
    sigma = u @ (w_mat @ v)
    return weight_oihw / sigma


def _fold_upsample_into_conv(w_hwio):
    """Fold nearest-x2 upsample into the 3x3 conv.

    Output pixel (2r+a, 2c+b) only sees original pixels at padded positions
    Xpad[r+a+i, c+b+j], i,j in {0,1}, with an effective 2x2 kernel obtained by
    summing adjacent 3x3 taps.  Returns W_eff of shape (2, 2, 4*Cin, Cout),
    indexed [a, b], laid out for an im2col patch ordered [i, j, cin].
    """
    Cin, Cout = w_hwio.shape[2], w_hwio.shape[3]
    m0 = jnp.array([[1.0, 0.0, 0.0], [0.0, 1.0, 1.0]], jnp.float32)  # sub-pixel 0
    m1 = jnp.array([[1.0, 1.0, 0.0], [0.0, 0.0, 1.0]], jnp.float32)  # sub-pixel 1
    maps = (m0, m1)
    rows = []
    for a in range(2):
        cols = []
        for b in range(2):
            k = jnp.einsum("id,je,decf->ijcf", maps[a], maps[b], w_hwio)
            cols.append(k.reshape(4 * Cin, Cout))
        rows.append(jnp.stack(cols, axis=0))
    return jnp.stack(rows, axis=0)  # (2, 2, 4*Cin, Cout)


# ----------------------------------------------------------------------------
# Generation-aware VMEM budget + tile picking
# ----------------------------------------------------------------------------
def _vmem_budget_and_limit():
    cap = 64 * 1024 * 1024  # conservative fallback (v7x per-core VMEM)
    try:
        cap = int(pltpu.get_tpu_info().vmem_capacity_bytes)
    except Exception:
        pass
    return int(cap * 0.60), int(cap * 0.75)


def _pick_tile_h(H, W, Cin, Cout, in_bytes, out_bytes, n_batch, budget_bytes):
    """Largest divisor of H whose per-step VMEM footprint fits the budget,
    preferring TH % 8 == 0 (unmasked sublane stores) and >= 2 total grid steps."""

    def footprint(th):
        inp = 2 * th * (W + 2) * Cin * in_bytes              # double-buffered main tile
        halo = 4 * (W + 2) * Cin * in_bytes                  # double-buffered halo rows
        wgt = 2 * 16 * Cin * Cout * in_bytes                 # (2,2,4Cin,Cout), x2 buffers
        outp = 2 * th * 2 * W * Cout * out_bytes             # double-buffered output tile
        work = th * W * (14 * Cin * in_bytes + 4 * Cout * 4)  # taps + patch + f32 temps
        return inp + halo + wgt + outp + work

    divisors = [d for d in range(1, H + 1) if H % d == 0]
    fits = [d for d in divisors if footprint(d) <= budget_bytes] or [1]
    if n_batch == 1 and len(fits) > 1:
        smaller = [d for d in fits if d < H]   # keep >= 2 grid steps for 2-TC parts
        if smaller:
            fits = smaller
    best = max(fits)
    for mod in (8, 4, 2):
        cand = [d for d in fits if d % mod == 0]
        if cand and max(cand) * 2 >= best:
            return max(cand)
    return best


# ----------------------------------------------------------------------------
# Kernels
# ----------------------------------------------------------------------------
def _make_taps(x_ref, halo_ref, TH, W, Cin):
    """9 im2col tap matrices taps[i][j], each (TH*W, Cin).

    tap(i, j) = rows [i, i+TH) x cols [j, j+W) of the conceptual halo-augmented
    (TH+2, W+2) window, flattened row-major over (row, col).  Only 3 large
    slice+reshape relayouts are issued; row shifts reuse them + the tiny halos.
    """
    halo = halo_ref[...]                                   # (2, W+2, Cin): [top, bottom]
    taps = [[None] * 3 for _ in range(3)]
    for j in range(3):
        full = x_ref[:, j:j + W, :].reshape(TH * W, Cin)   # (TH*W, Cin)
        top = halo[0, j:j + W, :]                          # (W, Cin)
        bot = halo[1, j:j + W, :]
        taps[1][j] = full
        if TH > 1:
            taps[0][j] = jnp.concatenate([top, full[:(TH - 1) * W]], axis=0)
            taps[2][j] = jnp.concatenate([full[W:], bot], axis=0)
        else:
            taps[0][j] = top
            taps[2][j] = bot
    return taps


def _conv_ab(taps, w_ref, a, b, Cin, split_k):
    """2x2 conv for sub-pixel (a, b): one K=4*Cin MXU matmul (im2col) or, for wide
    Cin, four accumulated K=Cin matmuls (no lane-concat)."""
    parts = (taps[a][b], taps[a][b + 1], taps[a + 1][b], taps[a + 1][b + 1])
    if split_k:
        acc = None
        for t in range(4):
            w_t = w_ref[a, b, pl.ds(t * Cin, Cin), :]
            d = jnp.dot(parts[t], w_t, preferred_element_type=jnp.float32)
            acc = d if acc is None else acc + d
        return acc
    patch = jnp.concatenate(parts, axis=-1)                # (TH*W, 4*Cin)
    return jnp.dot(patch, w_ref[a, b], preferred_element_type=jnp.float32)


def _stats_kernel(x_ref, halo_ref, w_ref, stat_ref, *, TH, W, Cin, Cout, split_k):
    """Phase 1: per-tile BN statistics as (sum, centered M2), combined across the
    four sub-pixel blocks with Chan's parallel update (numerically stable)."""
    taps = _make_taps(x_ref, halo_ref, TH, W, Cin)
    cnt = TH * W
    n_run, s_run, m2_run = 0, None, None
    for a in range(2):
        for b in range(2):
            y = _conv_ab(taps, w_ref, a, b, Cin, split_k)          # (cnt, Cout) f32
            s = jnp.sum(y, axis=0, keepdims=True)                  # (1, Cout)
            m = s * (1.0 / cnt)
            d = y - m
            m2 = jnp.sum(d * d, axis=0, keepdims=True)
            if n_run == 0:
                n_run, s_run, m2_run = cnt, s, m2
            else:
                delta = m - s_run * (1.0 / n_run)
                m2_run = m2_run + m2 + (delta * delta) * (n_run * cnt / (n_run + cnt))
                s_run = s_run + s
                n_run = n_run + cnt
    stat_ref[...] = jnp.concatenate([s_run, m2_run], axis=0)        # (2, Cout)


def _apply_kernel(x_ref, halo_ref, wv_ref, wg_ref, sv_ref, sg_ref, out_ref,
                  *, TH, W, Cin, Ch, split_k):
    """Phase 2: conv (BN scale pre-folded, value/gate weights pre-split) + BN shift
    + GLU, emitted as a lane-dense (TH, 4*W*Ch) tile with lane order [a][c][b][ch]."""
    taps = _make_taps(x_ref, halo_ref, TH, W, Cin)
    sv = sv_ref[...]                                               # (1, Ch)
    sg = sg_ref[...]
    lane = 2 * W * Ch
    for a in range(2):
        halves = []
        for b in range(2):
            v = _conv_ab(taps, wv_ref, a, b, Cin, split_k) + sv
            g = _conv_ab(taps, wg_ref, a, b, Cin, split_k) + sg
            # TODO(synk): if phase 2 ever becomes VALU-bound on v5e, swap the sigmoid
            #             divide for exp(-g) + pl.reciprocal(..., approx=True) (EUP).
            halves.append(v * jax.nn.sigmoid(g))                   # (TH*W, Ch) f32
        row = jnp.concatenate(halves, axis=1).reshape(TH, lane)    # lanes: [c][b][ch]
        out_ref[:, a * lane:(a + 1) * lane] = row.astype(out_ref.dtype)


# ----------------------------------------------------------------------------
# Wrapper: NCHW in -> NCHW out (matches the PyTorch module's forward)
# ----------------------------------------------------------------------------
def upsampling_layer(x_nchw, weight_oihw, gamma, beta, scale_factor=2, eps=1e-5,
                     out_dtype=jnp.float32):
    assert scale_factor == 2, "upsample fold-into-conv is derived for nearest x2"
    N, Cin, H, W = x_nchw.shape
    Cout = weight_oihw.shape[0]          # = out_dims * 2
    Ch = Cout // 2

    # Spectral norm + fold the nearest-x2 upsample into four 2x2 kernels.
    w_sn = _spectral_norm_weight(weight_oihw.astype(jnp.float32))
    w_hwio = jnp.transpose(w_sn, (2, 3, 1, 0))                   # (3, 3, Cin, Cout)
    w_eff = _fold_upsample_into_conv(w_hwio)                     # (2, 2, 4*Cin, Cout)

    # bf16 MXU inputs once channels are wide enough to matter (v5e MXU is bf16-native,
    # bf16 halves input DMA bytes); shallow layers stay f32 for precision.
    mxu_dtype = jnp.bfloat16 if Cin >= 32 else jnp.float32
    in_bytes = jnp.dtype(mxu_dtype).itemsize
    out_bytes = jnp.dtype(out_dtype).itemsize
    split_k = Cin >= 128                 # wide-K path: skip the im2col lane-concat

    budget, vmem_limit = _vmem_budget_and_limit()
    TH = _pick_tile_h(H, W, Cin, Cout, in_bytes, out_bytes, N, budget)
    n_t = H // TH

    # NCHW -> NHWC + W-only zero pad.  H halos go through a tiny side array instead
    # of a halo-duplicated copy of the whole input.
    # TODO(synk): folding the NCHW->NHWC transpose + W pad into the kernel DMA path
    #             would save one more pass over the (smaller) input tensor.
    x = jnp.transpose(x_nchw, (0, 2, 3, 1)).astype(mxu_dtype)    # (N, H, W, Cin)
    xw = jnp.pad(x, ((0, 0), (0, 0), (1, 1), (0, 0)))            # (N, H, W+2, Cin)
    zrow = jnp.zeros((N, 1, W + 2, Cin), mxu_dtype)
    if n_t > 1:
        top = jnp.concatenate([zrow, xw[:, TH - 1:H - 1:TH]], axis=1)   # (N, n_t, W+2, Cin)
        bot = jnp.concatenate([xw[:, TH:H:TH], zrow], axis=1)           # (N, n_t, W+2, Cin)
    else:
        top, bot = zrow, zrow
    halo = jnp.stack([top, bot], axis=2)                         # (N, n_t, 2, W+2, Cin)

    grid = (N, n_t)
    x_spec = pl.BlockSpec((None, TH, W + 2, Cin), lambda n, t: (n, t, 0, 0))
    halo_spec = pl.BlockSpec((None, None, 2, W + 2, Cin), lambda n, t: (n, t, 0, 0, 0))
    cparams = pltpu.CompilerParams(
        dimension_semantics=("parallel", "parallel"),
        vmem_limit_bytes=vmem_limit)

    # ---- Phase 1: per-tile BN statistics (sum + centered M2) ----
    w_full_spec = pl.BlockSpec((2, 2, 4 * Cin, Cout), lambda n, t: (0, 0, 0, 0))
    stats = pl.pallas_call(
        functools.partial(_stats_kernel, TH=TH, W=W, Cin=Cin, Cout=Cout, split_k=split_k),
        grid=grid,
        in_specs=[x_spec, halo_spec, w_full_spec],
        out_specs=pl.BlockSpec((None, None, 2, Cout), lambda n, t: (n, t, 0, 0)),
        out_shape=jax.ShapeDtypeStruct((N, n_t, 2, Cout), jnp.float32),
        compiler_params=cparams,
    )(xw, halo, w_eff.astype(mxu_dtype))

    # Cross-tile Chan combination (tiny, wrapper-side).
    cnt_tile = 4 * TH * W                                        # (2*TH)*(2*W) per tile
    total = N * n_t * cnt_tile                                   # = 4*N*H*W
    sums = stats[:, :, 0, :]                                     # (N, n_t, Cout)
    m2s = stats[:, :, 1, :]
    mean = jnp.sum(sums, axis=(0, 1)) / total
    mean_t = sums / cnt_tile
    m2_tot = jnp.sum(m2s, axis=(0, 1)) + cnt_tile * jnp.sum((mean_t - mean) ** 2, axis=(0, 1))
    var = jnp.maximum(m2_tot / total, 0.0)                       # biased (training-mode BN)
    scale = gamma.astype(jnp.float32) * lax.rsqrt(var + eps)
    shift = beta.astype(jnp.float32) - mean * scale

    # Fold BN scale into the conv weights; split value/gate halves so the kernel
    # never lane-slices the Cout axis.
    w_scaled = w_eff * scale[None, None, None, :]
    wv = w_scaled[..., :Ch].astype(mxu_dtype)
    wg = w_scaled[..., Ch:].astype(mxu_dtype)
    sv = shift[:Ch].reshape(1, Ch)
    sg = shift[Ch:].reshape(1, Ch)

    # ---- Phase 2: conv + BN + GLU, lane-dense interleaved output tiles ----
    w_half_spec = pl.BlockSpec((2, 2, 4 * Cin, Ch), lambda n, t: (0, 0, 0, 0))
    s_spec = pl.BlockSpec((1, Ch), lambda n, t: (0, 0))
    lane = 2 * W * Ch
    out = pl.pallas_call(
        functools.partial(_apply_kernel, TH=TH, W=W, Cin=Cin, Ch=Ch, split_k=split_k),
        grid=grid,
        in_specs=[x_spec, halo_spec, w_half_spec, w_half_spec, s_spec, s_spec],
        out_specs=pl.BlockSpec((None, None, TH, 2 * lane), lambda n, t: (n, t, 0, 0)),
        out_shape=jax.ShapeDtypeStruct((N, n_t, TH, 2 * lane), out_dtype),
        compiler_params=cparams,
    )(xw, halo, wv, wg, sv, sg)

    # (N, n_t, TH, 4*W*Ch) with lane order [a][c][b][ch] is exactly row-major
    # (N, 2H, 2W, Ch) -> free reshape; only the final NHWC->NCHW transpose copies.
    out_nhwc = out.reshape(N, 2 * H, 2 * W, Ch)
    return jnp.transpose(out_nhwc, (0, 3, 1, 2))                 # NHWC -> NCHW


# ----------------------------------------------------------------------------
# Pure-JAX reference of the same forward (for correctness check)
# ----------------------------------------------------------------------------
def _reference(x_nchw, weight_oihw, gamma, beta, scale_factor=2):
    w_sn = _spectral_norm_weight(weight_oihw.astype(jnp.float32))
    x = x_nchw.astype(jnp.float32)
    x_up = jnp.repeat(jnp.repeat(x, scale_factor, axis=2), scale_factor, axis=3)
    y = lax.conv_general_dilated(x_up, w_sn, window_strides=(1, 1),
                                 padding=((1, 1), (1, 1)),
                                 dimension_numbers=("NCHW", "OIHW", "NCHW"))
    mean = y.mean(axis=(0, 2, 3), keepdims=True)
    var = ((y - mean) ** 2).mean(axis=(0, 2, 3), keepdims=True)
    yn = (y - mean) / jnp.sqrt(var + 1e-5) * gamma.reshape(1, -1, 1, 1) + beta.reshape(1, -1, 1, 1)
    a, b = jnp.split(yn, 2, axis=1)
    return a * jax.nn.sigmoid(b)


if __name__ == "__main__":
    # Small shapes consistent with the module: batch=2, in_dims=4, out_dims=4, spatial=16.
    N, in_dims, out_dims, H, W = 2, 4, 4, 16, 16
    key = jax.random.PRNGKey(0)
    kx, kw = jax.random.split(key)

    x = jax.random.normal(kx, (N, in_dims, H, W), dtype=jnp.float32)
    weight = jax.random.normal(kw, (out_dims * 2, in_dims, 3, 3), dtype=jnp.float32) * 0.1
    gamma = jnp.ones((out_dims * 2,), jnp.float32)   # BatchNorm2d default init
    beta = jnp.zeros((out_dims * 2,), jnp.float32)

    out = jax.block_until_ready(upsampling_layer(x, weight, gamma, beta))
    ref = jax.block_until_ready(_reference(x, weight, gamma, beta))

    assert out.shape == (N, out_dims, H * 2, W * 2), out.shape
    err = float(jnp.max(jnp.abs(out - ref)))
    assert jnp.allclose(out, ref, rtol=2e-4, atol=2e-4), err

    print("KERNEL_OK")
</pallas_src>

<mosaic_0001>
module attributes {stable_mosaic.version = 11 : i64} {
  func.func @_stats_kernel(%arg0: i32, %arg1: i32, %arg2: memref<1x16x18x4xf32, #tpu.memory_space<vmem>>, %arg3: memref<1x1x2x18x4xf32, #tpu.memory_space<vmem>>, %arg4: memref<2x2x16x8xf32, #tpu.memory_space<vmem>>, %arg5: memref<1x1x2x8xf32, #tpu.memory_space<vmem>>) attributes {dimension_semantics = [#tpu.dimension_semantics<parallel>, #tpu.dimension_semantics<parallel>], iteration_bounds = array<i64: 2, 1>, scalar_prefetch = 0 : i64, scratch_operands = 0 : i64, tpu.core_type = #tpu.core_type<tc>, window_params = [{transform_indices = @transform_0, window_bounds = array<i64: 1, 16, 18, 4>}, {transform_indices = @transform_1, window_bounds = array<i64: 1, 1, 2, 18, 4>}, {pipeline_mode = #tpu.pipeline_mode<synchronous>, transform_indices = @transform_2, window_bounds = array<i64: 2, 2, 16, 8>}, {transform_indices = @transform_3, window_bounds = array<i64: 1, 1, 2, 8>}]} {
    %c0 = arith.constant 0 : index
    %c0_0 = arith.constant 0 : index
    %c0_1 = arith.constant 0 : index
    %c0_2 = arith.constant 0 : index
    %c0_3 = arith.constant 0 : index
    %0 = vector.load %arg3[%c0, %c0_0, %c0_1, %c0_2, %c0_3] : memref<1x1x2x18x4xf32, #tpu.memory_space<vmem>>, vector<1x1x2x18x4xf32>
    %1 = vector.shape_cast %0 : vector<1x1x2x18x4xf32> to vector<2x18x4xf32>
    %c0_4 = arith.constant 0 : index
    %c0_5 = arith.constant 0 : index
    %c0_6 = arith.constant 0 : index
    %c0_7 = arith.constant 0 : index
    %2 = vector.load %arg2[%c0_4, %c0_5, %c0_6, %c0_7] : memref<1x16x18x4xf32, #tpu.memory_space<vmem>>, vector<1x16x16x4xf32>
    %3 = vector.shape_cast %2 : vector<1x16x16x4xf32> to vector<16x16x4xf32>
    %4 = vector.shape_cast %3 : vector<16x16x4xf32> to vector<256x4xf32>
    %5 = vector.extract_strided_slice %1 {offsets = [0, 0, 0], sizes = [1, 16, 4], strides = [1, 1, 1]} : vector<2x18x4xf32> to vector<1x16x4xf32>
    %6 = vector.shape_cast %5 : vector<1x16x4xf32> to vector<16x4xf32>
    %7 = vector.extract_strided_slice %1 {offsets = [1, 0, 0], sizes = [1, 16, 4], strides = [1, 1, 1]} : vector<2x18x4xf32> to vector<1x16x4xf32>
    %8 = vector.shape_cast %7 : vector<1x16x4xf32> to vector<16x4xf32>
    %9 = vector.extract_strided_slice %4 {offsets = [0, 0], sizes = [240, 4], strides = [1, 1]} : vector<256x4xf32> to vector<240x4xf32>
    %10 = tpu.concatenate %6, %9 in 0 : vector<16x4xf32>, vector<240x4xf32> -> vector<256x4xf32>
    %11 = vector.extract_strided_slice %4 {offsets = [16, 0], sizes = [240, 4], strides = [1, 1]} : vector<256x4xf32> to vector<240x4xf32>
    %12 = tpu.concatenate %11, %8 in 0 : vector<240x4xf32>, vector<16x4xf32> -> vector<256x4xf32>
    %c0_8 = arith.constant 0 : index
    %c0_9 = arith.constant 0 : index
    %c1 = arith.constant 1 : index
    %c0_10 = arith.constant 0 : index
    %13 = vector.load %arg2[%c0_8, %c0_9, %c1, %c0_10] : memref<1x16x18x4xf32, #tpu.memory_space<vmem>>, vector<1x16x16x4xf32>
    %14 = vector.shape_cast %13 : vector<1x16x16x4xf32> to vector<16x16x4xf32>
    %15 = vector.shape_cast %14 : vector<16x16x4xf32> to vector<256x4xf32>
    %16 = vector.extract_strided_slice %1 {offsets = [0, 1, 0], sizes = [1, 16, 4], strides = [1, 1, 1]} : vector<2x18x4xf32> to vector<1x16x4xf32>
    %17 = vector.shape_cast %16 : vector<1x16x4xf32> to vector<16x4xf32>
    %18 = vector.extract_strided_slice %1 {offsets = [1, 1, 0], sizes = [1, 16, 4], strides = [1, 1, 1]} : vector<2x18x4xf32> to vector<1x16x4xf32>
    %19 = vector.shape_cast %18 : vector<1x16x4xf32> to vector<16x4xf32>
    %20 = vector.extract_strided_slice %15 {offsets = [0, 0], sizes = [240, 4], strides = [1, 1]} : vector<256x4xf32> to vector<240x4xf32>
    %21 = tpu.concatenate %17, %20 in 0 : vector<16x4xf32>, vector<240x4xf32> -> vector<256x4xf32>
    %22 = vector.extract_strided_slice %15 {offsets = [16, 0], sizes = [240, 4], strides = [1, 1]} : vector<256x4xf32> to vector<240x4xf32>
    %23 = tpu.concatenate %22, %19 in 0 : vector<240x4xf32>, vector<16x4xf32> -> vector<256x4xf32>
    %c0_11 = arith.constant 0 : index
    %c0_12 = arith.constant 0 : index
    %c2 = arith.constant 2 : index
    %c0_13 = arith.constant 0 : index
    %24 = vector.load %arg2[%c0_11, %c0_12, %c2, %c0_13] : memref<1x16x18x4xf32, #tpu.memory_space<vmem>>, vector<1x16x16x4xf32>
    %25 = vector.shape_cast %24 : vector<1x16x16x4xf32> to vector<16x16x4xf32>
    %26 = vector.shape_cast %25 : vector<16x16x4xf32> to vector<256x4xf32>
    %27 = vector.extract_strided_slice %1 {offsets = [0, 2, 0], sizes = [1, 16, 4], strides = [1, 1, 1]} : vector<2x18x4xf32> to vector<1x16x4xf32>
    %28 = vector.shape_cast %27 : vector<1x16x4xf32> to vector<16x4xf32>
    %29 = vector.extract_strided_slice %1 {offsets = [1, 2, 0], sizes = [1, 16, 4], strides = [1, 1, 1]} : vector<2x18x4xf32> to vector<1x16x4xf32>
    %30 = vector.shape_cast %29 : vector<1x16x4xf32> to vector<16x4xf32>
    %31 = vector.extract_strided_slice %26 {offsets = [0, 0], sizes = [240, 4], strides = [1, 1]} : vector<256x4xf32> to vector<240x4xf32>
    %32 = tpu.concatenate %28, %31 in 0 : vector<16x4xf32>, vector<240x4xf32> -> vector<256x4xf32>
    %33 = vector.extract_strided_slice %26 {offsets = [16, 0], sizes = [240, 4], strides = [1, 1]} : vector<256x4xf32> to vector<240x4xf32>
    %34 = tpu.concatenate %33, %30 in 0 : vector<240x4xf32>, vector<16x4xf32> -> vector<256x4xf32>
    %35 = tpu.concatenate %10, %21, %4, %15 in 1 : vector<256x4xf32>, vector<256x4xf32>, vector<256x4xf32>, vector<256x4xf32> -> vector<256x16xf32>
    %c0_14 = arith.constant 0 : index
    %c0_15 = arith.constant 0 : index
    %c0_16 = arith.constant 0 : index
    %c0_17 = arith.constant 0 : index
    %36 = vector.load %arg4[%c0_14, %c0_15, %c0_16, %c0_17] : memref<2x2x16x8xf32, #tpu.memory_space<vmem>>, vector<1x1x16x8xf32>
    %37 = vector.shape_cast %36 : vector<1x1x16x8xf32> to vector<16x8xf32>
    %cst = arith.constant dense<0.000000e+00> : vector<256x8xf32>
    %38 = tpu.matmul %35, %37, %cst {dimension_numbers = #tpu.dot_dimension_numbers<[1], [0], [0], [1], [0, 0, 1, 1], [], []>} : vector<256x16xf32>, vector<16x8xf32>, vector<256x8xf32> -> vector<256x8xf32>
    %cst_18 = arith.constant dense<0.000000e+00> : vector<8xf32>
    %39 = vector.multi_reduction <add>, %38, %cst_18 [0] : vector<256x8xf32> to vector<8xf32>
    %40 = vector.shape_cast %39 : vector<8xf32> to vector<1x8xf32>
    %cst_19 = arith.constant 3.906250e-03 : f32
    %41 = vector.broadcast %cst_19 : f32 to vector<1x8xf32>
    %42 = arith.mulf %40, %41 : vector<1x8xf32>
    %43 = vector.broadcast %42 : vector<1x8xf32> to vector<256x8xf32>
    %44 = arith.subf %38, %43 : vector<256x8xf32>
    %45 = arith.mulf %44, %44 : vector<256x8xf32>
    %cst_20 = arith.constant dense<0.000000e+00> : vector<8xf32>
    %46 = vector.multi_reduction <add>, %45, %cst_20 [0] : vector<256x8xf32> to vector<8xf32>
    %47 = vector.shape_cast %46 : vector<8xf32> to vector<1x8xf32>
    %48 = tpu.concatenate %21, %32, %15, %26 in 1 : vector<256x4xf32>, vector<256x4xf32>, vector<256x4xf32>, vector<256x4xf32> -> vector<256x16xf32>
    %c0_21 = arith.constant 0 : index
    %c1_22 = arith.constant 1 : index
    %c0_23 = arith.constant 0 : index
    %c0_24 = arith.constant 0 : index
    %49 = vector.load %arg4[%c0_21, %c1_22, %c0_23, %c0_24] : memref<2x2x16x8xf32, #tpu.memory_space<vmem>>, vector<1x1x16x8xf32>
    %50 = vector.shape_cast %49 : vector<1x1x16x8xf32> to vector<16x8xf32>
    %cst_25 = arith.constant dense<0.000000e+00> : vector<256x8xf32>
    %51 = tpu.matmul %48, %50, %cst_25 {dimension_numbers = #tpu.dot_dimension_numbers<[1], [0], [0], [1], [0, 0, 1, 1], [], []>} : vector<256x16xf32>, vector<16x8xf32>, vector<256x8xf32> -> vector<256x8xf32>
    %cst_26 = arith.constant dense<0.000000e+00> : vector<8xf32>
    %52 = vector.multi_reduction <add>, %51, %cst_26 [0] : vector<256x8xf32> to vector<8xf32>
    %53 = vector.shape_cast %52 : vector<8xf32> to vector<1x8xf32>
    %cst_27 = arith.constant 3.906250e-03 : f32
    %54 = vector.broadcast %cst_27 : f32 to vector<1x8xf32>
    %55 = arith.mulf %53, %54 : vector<1x8xf32>
    %56 = vector.broadcast %55 : vector<1x8xf32> to vector<256x8xf32>
    %57 = arith.subf %51, %56 : vector<256x8xf32>
    %58 = arith.mulf %57, %57 : vector<256x8xf32>
    %cst_28 = arith.constant dense<0.000000e+00> : vector<8xf32>
    %59 = vector.multi_reduction <add>, %58, %cst_28 [0] : vector<256x8xf32> to vector<8xf32>
    %60 = vector.shape_cast %59 : vector<8xf32> to vector<1x8xf32>
    %cst_29 = arith.constant 3.906250e-03 : f32
    %61 = vector.broadcast %cst_29 : f32 to vector<1x8xf32>
    %62 = arith.mulf %40, %61 : vector<1x8xf32>
    %63 = arith.subf %55, %62 : vector<1x8xf32>
    %64 = arith.addf %47, %60 : vector<1x8xf32>
    %65 = arith.mulf %63, %63 : vector<1x8xf32>
    %cst_30 = arith.constant 1.280000e+02 : f32
    %66 = vector.broadcast %cst_30 : f32 to vector<1x8xf32>
    %67 = arith.mulf %65, %66 : vector<1x8xf32>
    %68 = arith.addf %64, %67 : vector<1x8xf32>
    %69 = arith.addf %40, %53 : vector<1x8xf32>
    %70 = tpu.concatenate %4, %15, %12, %23 in 1 : vector<256x4xf32>, vector<256x4xf32>, vector<256x4xf32>, vector<256x4xf32> -> vector<256x16xf32>
    %c1_31 = arith.constant 1 : index
    %c0_32 = arith.constant 0 : index
    %c0_33 = arith.constant 0 : index
    %c0_34 = arith.constant 0 : index
    %71 = vector.load %arg4[%c1_31, %c0_32, %c0_33, %c0_34] : memref<2x2x16x8xf32, #tpu.memory_space<vmem>>, vector<1x1x16x8xf32>
    %72 = vector.shape_cast %71 : vector<1x1x16x8xf32> to vector<16x8xf32>
    %cst_35 = arith.constant dense<0.000000e+00> : vector<256x8xf32>
    %73 = tpu.matmul %70, %72, %cst_35 {dimension_numbers = #tpu.dot_dimension_numbers<[1], [0], [0], [1], [0, 0, 1, 1], [], []>} : vector<256x16xf32>, vector<16x8xf32>, vector<256x8xf32> -> vector<256x8xf32>
    %cst_36 = arith.constant dense<0.000000e+00> : vector<8xf32>
    %74 = vector.multi_reduction <add>, %73, %cst_36 [0] : vector<256x8xf32> to vector<8xf32>
    %75 = vector.shape_cast %74 : vector<8xf32> to vector<1x8xf32>
    %cst_37 = arith.constant 3.906250e-03 : f32
    %76 = vector.broadcast %cst_37 : f32 to vector<1x8xf32>
    %77 = arith.mulf %75, %76 : vector<1x8xf32>
    %78 = vector.broadcast %77 : vector<1x8xf32> to vector<256x8xf32>
    %79 = arith.subf %73, %78 : vector<256x8xf32>
    %80 = arith.mulf %79, %79 : vector<256x8xf32>
    %cst_38 = arith.constant dense<0.000000e+00> : vector<8xf32>
    %81 = vector.multi_reduction <add>, %80, %cst_38 [0] : vector<256x8xf32> to vector<8xf32>
    %82 = vector.shape_cast %81 : vector<8xf32> to vector<1x8xf32>
    %cst_39 = arith.constant 0.001953125 : f32
    %83 = vector.broadcast %cst_39 : f32 to vector<1x8xf32>
    %84 = arith.mulf %69, %83 : vector<1x8xf32>
    %85 = arith.subf %77, %84 : vector<1x8xf32>
    %86 = arith.addf %68, %82 : vector<1x8xf32>
    %87 = arith.mulf %85, %85 : vector<1x8xf32>
    %cst_40 = arith.constant 170.666672 : f32
    %88 = vector.broadcast %cst_40 : f32 to vector<1x8xf32>
    %89 = arith.mulf %87, %88 : vector<1x8xf32>
    %90 = arith.addf %86, %89 : vector<1x8xf32>
    %91 = arith.addf %69, %75 : vector<1x8xf32>
    %92 = tpu.concatenate %15, %26, %23, %34 in 1 : vector<256x4xf32>, vector<256x4xf32>, vector<256x4xf32>, vector<256x4xf32> -> vector<256x16xf32>
    %c1_41 = arith.constant 1 : index
    %c1_42 = arith.constant 1 : index
    %c0_43 = arith.constant 0 : index
    %c0_44 = arith.constant 0 : index
    %93 = vector.load %arg4[%c1_41, %c1_42, %c0_43, %c0_44] : memref<2x2x16x8xf32, #tpu.memory_space<vmem>>, vector<1x1x16x8xf32>
    %94 = vector.shape_cast %93 : vector<1x1x16x8xf32> to vector<16x8xf32>
    %cst_45 = arith.constant dense<0.000000e+00> : vector<256x8xf32>
    %95 = tpu.matmul %92, %94, %cst_45 {dimension_numbers = #tpu.dot_dimension_numbers<[1], [0], [0], [1], [0, 0, 1, 1], [], []>} : vector<256x16xf32>, vector<16x8xf32>, vector<256x8xf32> -> vector<256x8xf32>
    %cst_46 = arith.constant dense<0.000000e+00> : vector<8xf32>
    %96 = vector.multi_reduction <add>, %95, %cst_46 [0] : vector<256x8xf32> to vector<8xf32>
    %97 = vector.shape_cast %96 : vector<8xf32> to vector<1x8xf32>
    %cst_47 = arith.constant 3.906250e-03 : f32
    %98 = vector.broadcast %cst_47 : f32 to vector<1x8xf32>
    %99 = arith.mulf %97, %98 : vector<1x8xf32>
    %100 = vector.broadcast %99 : vector<1x8xf32> to vector<256x8xf32>
    %101 = arith.subf %95, %100 : vector<256x8xf32>
    %102 = arith.mulf %101, %101 : vector<256x8xf32>
    %cst_48 = arith.constant dense<0.000000e+00> : vector<8xf32>
    %103 = vector.multi_reduction <add>, %102, %cst_48 [0] : vector<256x8xf32> to vector<8xf32>
    %104 = vector.shape_cast %103 : vector<8xf32> to vector<1x8xf32>
    %cst_49 = arith.constant 0.00130208337 : f32
    %105 = vector.broadcast %cst_49 : f32 to vector<1x8xf32>
    %106 = arith.mulf %91, %105 : vector<1x8xf32>
    %107 = arith.subf %99, %106 : vector<1x8xf32>
    %108 = arith.addf %90, %104 : vector<1x8xf32>
    %109 = arith.mulf %107, %107 : vector<1x8xf32>
    %cst_50 = arith.constant 1.920000e+02 : f32
    %110 = vector.broadcast %cst_50 : f32 to vector<1x8xf32>
    %111 = arith.mulf %109, %110 : vector<1x8xf32>
    %112 = arith.addf %108, %111 : vector<1x8xf32>
    %113 = arith.addf %91, %97 : vector<1x8xf32>
    %114 = tpu.concatenate %113, %112 in 0 : vector<1x8xf32>, vector<1x8xf32> -> vector<2x8xf32>
    %c0_51 = arith.constant 0 : index
    %c0_52 = arith.constant 0 : index
    %c0_53 = arith.constant 0 : index
    %c0_54 = arith.constant 0 : index
    %115 = vector.load %arg5[%c0_51, %c0_52, %c0_53, %c0_54] : memref<1x1x2x8xf32, #tpu.memory_space<vmem>>, vector<1x1x2x8xf32>
    %116 = vector.shape_cast %115 : vector<1x1x2x8xf32> to vector<2x8xf32>
    %117 = vector.shape_cast %114 : vector<2x8xf32> to vector<1x1x2x8xf32>
    tpu.vector_store %arg5[%c0_51, %c0_52, %c0_53, %c0_54], %117 {strides = array<i32>} : memref<1x1x2x8xf32, #tpu.memory_space<vmem>>, vector<1x1x2x8xf32>,
    return
  }
  func.func @transform_0(%arg0: i32, %arg1: i32) -> (i32, i32, i32, i32) {
    %c0_i32 = arith.constant 0 : i32
    %c0_i32_0 = arith.constant 0 : i32
    %c0_i32_1 = arith.constant 0 : i32
    return %arg0, %arg1, %c0_i32, %c0_i32_0 : i32, i32, i32, i32
  }
  func.func @transform_1(%arg0: i32, %arg1: i32) -> (i32, i32, i32, i32, i32) {
    %c0_i32 = arith.constant 0 : i32
    %c0_i32_0 = arith.constant 0 : i32
    %c0_i32_1 = arith.constant 0 : i32
    %c0_i32_2 = arith.constant 0 : i32
    return %arg0, %arg1, %c0_i32, %c0_i32_0, %c0_i32_1 : i32, i32, i32, i32, i32
  }
  func.func @transform_2(%arg0: i32, %arg1: i32) -> (i32, i32, i32, i32) {
    %c0_i32 = arith.constant 0 : i32
    %c0_i32_0 = arith.constant 0 : i32
    %c0_i32_1 = arith.constant 0 : i32
    %c0_i32_2 = arith.constant 0 : i32
    %c0_i32_3 = arith.constant 0 : i32
    return %c0_i32, %c0_i32_0, %c0_i32_1, %c0_i32_2 : i32, i32, i32, i32
  }
  func.func @transform_3(%arg0: i32, %arg1: i32) -> (i32, i32, i32, i32) {
    %c0_i32 = arith.constant 0 : i32
    %c0_i32_0 = arith.constant 0 : i32
    %c0_i32_1 = arith.constant 0 : i32
    return %arg0, %arg1, %c0_i32, %c0_i32_0 : i32, i32, i32, i32
  }
}

</mosaic_0001>

<llo_original>
// kernel: tpu_custom_call.1
$region0: #{tpu_custom_call.1}
  #allocation0 [shape = 'u32[]', space=smem, size = 0x4, offset = 0x4, fixed_abs, tag = 'smem constant byte address 0x4 - core index']
  #allocation1 [shape = 'u32[72,128]{1,0:T(1,128)}', space=vmem, size = 0x9000, scoped, tag = 'internal scratch']
  %s0 = inlined_call_operand.vmem [shape: f32[2,16,18,4], index: 0, kind: input, shape index: {}]
  %s1 = inlined_call_operand.vmem [shape: f32[2,1,2,18,4], index: 1, kind: input, shape index: {}]
  %s2 = inlined_call_operand.vmem [shape: f32[2,2,16,8], index: 2, kind: input, shape index: {}]
  %s3 = inlined_call_operand.hbm [shape: f32[2,1,2,8], index: 3, kind: output, shape index: {}]
  %s4 = sld [smem:[#allocation0]]
  $region45: #{tpu_custom_call.1} parent=0
    _
  %s6 = ssub.s32 1, %s4
  %s7 = scalar_select 0, %s6, %s4
  $region1: #{tpu_custom_call.1} parent=0
    #allocation2 [shape = 'u8[2048]{0}', space=vmem, size = 0x800, scoped, tag = 'output window, operand 0']
    #allocation3 [shape = 's32[2]{0}', space=sflag, size = 0x8, scoped, tag = 'scoped memory for tpu_custom_call.1']
    %8 = vsyncpa [#allocation3], 0
    %s9 = scalar_lea.sflag [#allocation3], 1
    %10 = vsyncpa %s9, 0
    loop: start=0, step=1, limit=4
    $region2: #{tpu_custom_call.1} parent=1 // loop_pre_header
      _
    $region3: #{tpu_custom_call.1} parent=1 // loop_header
      %s12 = sphi 0, %s16
      %p13 = scmp.ge.s32.totalorder %s12, 4
      %s19 = sphi 0, %s31
      %s20 = sphi 0, %s27
      %s21 = sphi 0, %s19
      %s22 = sphi 0, %s20
      %s23 = sphi 0, %s21
      %s24 = sphi 0, %s22
      %s36 = sphi 0, %s38
      %s39 = sphi 0, %s36
      %s40 = sphi 0, %s39
      %s56 = sphi 0, %s40
      %s64 = sphi 0, %s66
      %s67 = sphi 0, %s64
      %s68 = sphi 0, %s67
      %s84 = sphi 0, %s68
      %s88 = sphi 0, %s88
      %s90 = sphi 0, %s88
      %s91 = sphi 0, %s90
      %s105 = sphi 0, %s91
      %s113 = sphi 0, %s115
      %s116 = sphi 0, %s113
      %s117 = sphi 0, %s116
      %s133 = sphi 0, %s117
    $region4: #{tpu_custom_call.1} parent=1 // loop_header_branch
      %15 = sbr.rel (%p13) target = $region8
    $region5: #{tpu_custom_call.1} parent=1 // loop_body
      %s17 = ssub.s32 %s12, 1
      %s18 = ssub.s32 %s12, 2
      %s25 = sadd.s32 1, %s20
      %p26 = scmp.ge.s32.totalorder %s25, 1
      %s27 = scalar_select %p26, 0, %s25
      %s28 = sadd.s32 1, %s19
      %s29 = scalar_select %p26, %s28, %s19
      %p30 = scmp.ge.s32.totalorder %s29, 2
      %s31 = scalar_select %p30, 0, %s29
      %s32 = ssub.s32 %s19, %s31
      %s33 = ssub.s32 %s20, %s27
      %s34 = sor.u32 %s32, %s33
      %p35 = scmp.eq.s32.totalorder %s34, 0
      %s37 = sadd.s32 %s36, 1
      %s38 = scalar_select %p35, %s36, %s37
      %p41 = pneg %p35
      %p42 = scmp.eq.s32.totalorder %s12, 1
      %p43 = por %p41, %p42
      %p44 = scmp.ne.s32.totalorder %s36, %s39
      %p45 = scmp.eq.s32.totalorder %s12, 0
      %p46 = por %p44, %p45
      %p47 = scmp.ne.s32.totalorder %s36, %s39
      %p48 = scmp.eq.s32.totalorder %s17, 1
      %p49 = por %p47, %p48
      %p50 = scmp.ne.s32.totalorder %s39, %s40
      %p51 = scmp.eq.s32.totalorder %s17, 0
      %p52 = por %p50, %p51
      %p53 = scmp.ne.s32.totalorder %s39, %s40
      %p54 = scmp.eq.s32.totalorder %s18, 1
      %p55 = por %p53, %p54
      %p57 = scmp.ne.s32.totalorder %s40, %s56
      %p58 = scmp.eq.s32.totalorder %s18, 0
      %p59 = por %p57, %p58
      %s60 = ssub.s32 %s19, %s31
      %s61 = ssub.s32 %s20, %s27
      %s62 = sor.u32 %s60, %s61
      %p63 = scmp.eq.s32.totalorder %s62, 0
      %s65 = sadd.s32 %s64, 1
      %s66 = scalar_select %p63, %s64, %s65
      %p69 = pneg %p63
      %p70 = scmp.eq.s32.totalorder %s12, 1
      %p71 = por %p69, %p70
      %p72 = scmp.ne.s32.totalorder %s64, %s67
      %p73 = scmp.eq.s32.totalorder %s12, 0
      %p74 = por %p72, %p73
      %p75 = scmp.ne.s32.totalorder %s64, %s67
      %p76 = scmp.eq.s32.totalorder %s17, 1
      %p77 = por %p75, %p76
      %p78 = scmp.ne.s32.totalorder %s67, %s68
      %p79 = scmp.eq.s32.totalorder %s17, 0
      %p80 = por %p78, %p79
      %p81 = scmp.ne.s32.totalorder %s67, %s68
      %p82 = scmp.eq.s32.totalorder %s18, 1
      %p83 = por %p81, %p82
      %p85 = scmp.ne.s32.totalorder %s68, %s84
      %p86 = scmp.eq.s32.totalorder %s18, 0
      %p87 = por %p85, %p86
      %s89 = sadd.s32 %s88, 1
      %p92 = scmp.eq.s32.totalorder %s12, 1
      %p93 = scmp.ne.s32.totalorder %s88, %s90
      %p94 = scmp.eq.s32.totalorder %s12, 0
      %p95 = por %p93, %p94
      %p96 = scmp.ne.s32.totalorder %s88, %s90
      %p97 = scmp.eq.s32.totalorder %s17, 1
      %p98 = por %p96, %p97
      %p99 = scmp.ne.s32.totalorder %s90, %s91
      %p100 = scmp.eq.s32.totalorder %s17, 0
      %p101 = por %p99, %p100
      %p102 = scmp.ne.s32.totalorder %s90, %s91
      %p103 = scmp.eq.s32.totalorder %s18, 1
      %p104 = por %p102, %p103
      %p106 = scmp.ne.s32.totalorder %s91, %s105
      %p107 = scmp.eq.s32.totalorder %s18, 0
      %p108 = por %p106, %p107
      %s109 = ssub.s32 %s19, %s31
      %s110 = ssub.s32 %s20, %s27
      %s111 = sor.u32 %s109, %s110
      %p112 = scmp.eq.s32.totalorder %s111, 0
      %s114 = sadd.s32 %s113, 1
      %s115 = scalar_select %p112, %s113, %s114
      %p118 = pneg %p112
      %p119 = scmp.eq.s32.totalorder %s12, 1
      %p120 = por %p118, %p119
      %p121 = scmp.ne.s32.totalorder %s113, %s116
      %p122 = scmp.eq.s32.totalorder %s12, 0
      %p123 = por %p121, %p122
      %p124 = scmp.ne.s32.totalorder %s113, %s116
      %p125 = scmp.eq.s32.totalorder %s17, 1
      %p126 = por %p124, %p125
      %p127 = scmp.ne.s32.totalorder %s116, %s117
      %p128 = scmp.eq.s32.totalorder %s17, 0
      %p129 = por %p127, %p128
      %p130 = scmp.ne.s32.totalorder %s116, %s117
      %p131 = scmp.eq.s32.totalorder %s18, 1
      %p132 = por %p130, %p131
      %p134 = scmp.ne.s32.totalorder %s117, %s133
      %p135 = scmp.eq.s32.totalorder %s18, 0
      %p136 = por %p134, %p135
      %p137 = scmp.le.s32.totalorder 1, %s12
      %p138 = scmp.lt.s32.totalorder %s12, 3
      %p139 = pnand %p137, %p138
      %p140 = pneg %p139
      // Predicated region
      $region9: #{tpu_custom_call.1} parent=5 // pred_check
        _
      $region10: #{tpu_custom_call.1} parent=5 // pred_check_branch
        %142 = sbr.rel (%p139) target = $region12
      $region11: #{tpu_custom_call.1} parent=5 // pred_region
        %s143 = ssub.s32 %s12, 1
        // Predicated region
        $region13: #{tpu_custom_call.1} parent=11 // pred_check
          %p144 = pneg %p101
        $region14: #{tpu_custom_call.1} parent=11 // pred_check_branch
          %146 = sbr.rel (%p144) target = $region16
        $region15: #{tpu_custom_call.1} parent=11 // pred_region
          _
        $region16: #{tpu_custom_call.1} parent=11 // pred_fallthru
          _
      $region12: #{tpu_custom_call.1} parent=5 // pred_fallthru
        _
      %p147 = scmp.lt.s32.totalorder %s12, 2
      // Predicated region
      $region17: #{tpu_custom_call.1} parent=5 // pred_check
        %p148 = pneg %p147
      $region18: #{tpu_custom_call.1} parent=5 // pred_check_branch
        %150 = sbr.rel (%p148) target = $region20
      $region19: #{tpu_custom_call.1} parent=5 // pred_region
        // Predicated region
        $region21: #{tpu_custom_call.1} parent=19 // pred_check
          %p151 = pneg %p46
        $region22: #{tpu_custom_call.1} parent=19 // pred_check_branch
          %153 = sbr.rel (%p151) target = $region24
        $region23: #{tpu_custom_call.1} parent=19 // pred_region
          %s154 = smul.u32 16, %s20
          %p155 = scmp.lt.s32.totalorder %s19, 1
          %s156 = scalar_select %p155, %s19, 1
          %p157 = scmp.lt.s32.totalorder %s154, 15
          %s158 = scalar_select %p157, %s154, 15
          %s159 = smul.addr %s158, 3
          %s160 = smul.addr %s156, 48
          %s161 = sadd.s32 %s159, %s160
          %s162 = smul.addr %s161, 8
          %s163 = scalar_lea.vmem %s0, %s162
          %s164 = smul.u32 16, %s20
        $region24: #{tpu_custom_call.1} parent=19 // pred_fallthru
          _
        // Predicated region
        $region25: #{tpu_custom_call.1} parent=19 // pred_check
          %p165 = pneg %p74
        $region26: #{tpu_custom_call.1} parent=19 // pred_check_branch
          %167 = sbr.rel (%p165) target = $region28
        $region27: #{tpu_custom_call.1} parent=19 // pred_region
          %p168 = scmp.lt.s32.totalorder %s19, 1
          %s169 = scalar_select %p168, %s19, 1
          %p170 = scmp.lt.s32.totalorder %s20, 0
          %s171 = scalar_select %p170, %s20, 0
          %s172 = smul.addr %s171, 6
          %s173 = smul.addr %s169, 6
          %s174 = sadd.s32 %s172, %s173
          %s175 = smul.addr %s174, 8
          %s176 = scalar_lea.vmem %s1, %s175
        $region28: #{tpu_custom_call.1} parent=19 // pred_fallthru
          _
      $region20: #{tpu_custom_call.1} parent=5 // pred_fallthru
        _
      %p177 = scmp.le.s32.totalorder 1, %s12
      %p178 = scmp.lt.s32.totalorder %s12, 3
      %p179 = pnand %p177, %p178
      %p180 = pneg %p179
      // Predicated region
      $region29: #{tpu_custom_call.1} parent=5 // pred_check
        _
      $region30: #{tpu_custom_call.1} parent=5 // pred_check_branch
        %182 = sbr.rel (%p179) target = $region32
      $region31: #{tpu_custom_call.1} parent=5 // pred_region
        %s183 = ssub.s32 %s12, 1
        %s184 = smul.u32 16, %s22
        %p185 = scmp.lt.s32.totalorder %s21, 1
        %s186 = scalar_select %p185, %s21, 1
        %p187 = scmp.lt.s32.totalorder %s184, 15
        %s188 = scalar_select %p187, %s184, 15
        %s189 = smul.addr %s188, 3
        %s190 = smul.addr %s186, 48
        %s191 = sadd.s32 %s189, %s190
        %s192 = smul.addr %s191, 8
        %s193 = scalar_lea.vmem %s0, %s192
        %p194 = pneg %p52
        %p195 = pneg %p49
        %p196 = scmp.lt.s32.totalorder %s21, 1
        %s197 = scalar_select %p196, %s21, 1
        %p198 = scmp.lt.s32.totalorder %s22, 0
        %s199 = scalar_select %p198, %s22, 0
        %s200 = smul.addr %s199, 6
        %s201 = smul.addr %s197, 6
        %s202 = sadd.s32 %s200, %s201
        %s203 = smul.addr %s202, 8
        %s204 = scalar_lea.vmem %s1, %s203
        %p205 = pneg %p80
        %p206 = pneg %p77
        %p207 = pneg %p101
        %p208 = pneg %p98
        %p209 = pneg %p129
        %p210 = pneg %p126
        %s211 = sand.u32 %s116, 1
        %s212 = scalar_lea.sflag [#allocation3], %s211
        %s213 = sand.u32 %s116, 1
        %s214 = smul.addr %s213, 2
        %s215 = scalar_lea.vmem [#allocation2], %s214
        %s216 = smul.u32 16, %s22
        %p217 = scmp.lt.s32.totalorder %s21, 1
        %s218 = scalar_select %p217, %s21, 1
        %p219 = scmp.lt.s32.totalorder %s216, 15
        %s220 = scalar_select %p219, %s216, 15
        %s221 = smul.addr %s220, 3
        %s222 = smul.addr %s218, 48
        %s223 = sadd.s32 %s221, %s222
        %s224 = smul.addr %s223, 8
        %s225 = scalar_lea.vmem %s0, %s224
        %s226 = smul.u32 16, %s22
        %p227 = scmp.lt.s32.totalorder %s21, 1
        %s228 = scalar_select %p227, %s21, 1
        %p229 = scmp.lt.s32.totalorder %s22, 0
        %s230 = scalar_select %p229, %s22, 0
        %s231 = smul.addr %s230, 6
        %s232 = smul.addr %s228, 6
        %s233 = sadd.s32 %s231, %s232
        %s234 = smul.addr %s233, 8
        %s235 = scalar_lea.vmem %s1, %s234
        %v236 = vld [vmem:[%s235] sm:$0xff]
        %v237 = vld [vmem:[%s235 + $0x8] sm:$0xff]
        %v238 = vld [vmem:[%s235 + $0x10] sm:$0x3]
        %v239 = vld [vmem:[%s235 + $0x18] sm:$0xff]
        %v240 = vld [vmem:[%s235 + $0x20] sm:$0xff]
        %v241 = vld [vmem:[%s235 + $0x28] sm:$0x3]
        %v242 = vld [vmem:[%s225] sm:$0xff]
        %v243 = vld [vmem:[%s225 + $0x8] sm:$0xff]
        %v244 = vld [vmem:[%s225 + $0x18] sm:$0xff]
        %v245 = vld [vmem:[%s225 + $0x20] sm:$0xff]
        %v246 = vld [vmem:[%s225 + $0x30] sm:$0xff]
        %v247 = vld [vmem:[%s225 + $0x38] sm:$0xff]
        %v248 = vld [vmem:[%s225 + $0x48] sm:$0xff]
        %v249 = vld [vmem:[%s225 + $0x50] sm:$0xff]
        %v250 = vld [vmem:[%s225 + $0x60] sm:$0xff]
        %v251 = vld [vmem:[%s225 + $0x68] sm:$0xff]
        %v252 = vld [vmem:[%s225 + $0x78] sm:$0xff]
        %v253 = vld [vmem:[%s225 + $0x80] sm:$0xff]
        %v254 = vld [vmem:[%s225 + $0x90] sm:$0xff]
        %v255 = vld [vmem:[%s225 + $0x98] sm:$0xff]
        %v256 = vld [vmem:[%s225 + $0xa8] sm:$0xff]
        %v257 = vld [vmem:[%s225 + $0xb0] sm:$0xff]
        %v258 = vld [vmem:[%s225 + $0xc0] sm:$0xff]
        %v259 = vld [vmem:[%s225 + $0xc8] sm:$0xff]
        %v260 = vld [vmem:[%s225 + $0xd8] sm:$0xff]
        %v261 = vld [vmem:[%s225 + $0xe0] sm:$0xff]
        %v262 = vld [vmem:[%s225 + $0xf0] sm:$0xff]
        %v263 = vld [vmem:[%s225 + $0xf8] sm:$0xff]
        %v264 = vld [vmem:[%s225 + $0x108] sm:$0xff]
        %v265 = vld [vmem:[%s225 + $0x110] sm:$0xff]
        %v266 = vld [vmem:[%s225 + $0x120] sm:$0xff]
        %v267 = vld [vmem:[%s225 + $0x128] sm:$0xff]
        %v268 = vld [vmem:[%s225 + $0x138] sm:$0xff]
        %v269 = vld [vmem:[%s225 + $0x140] sm:$0xff]
        %v270 = vld [vmem:[%s225 + $0x150] sm:$0xff]
        %v271 = vld [vmem:[%s225 + $0x158] sm:$0xff]
        %v272 = vld [vmem:[%s225 + $0x168] sm:$0xff]
        %v273 = vld [vmem:[%s225 + $0x170] sm:$0xff]
        %v274 = vld [vmem:[%s225 + $0x1] sm:$0xff]
        %v275 = vld [vmem:[%s225 + $0x9] sm:$0xff]
        %v276 = vld [vmem:[%s225 + $0x19] sm:$0xff]
        %v277 = vld [vmem:[%s225 + $0x21] sm:$0xff]
        %v278 = vld [vmem:[%s225 + $0x31] sm:$0xff]
        %v279 = vld [vmem:[%s225 + $0x39] sm:$0xff]
        %v280 = vld [vmem:[%s225 + $0x49] sm:$0xff]
        %v281 = vld [vmem:[%s225 + $0x51] sm:$0xff]
        %v282 = vld [vmem:[%s225 + $0x61] sm:$0xff]
        %v283 = vld [vmem:[%s225 + $0x69] sm:$0xff]
        %v284 = vld [vmem:[%s225 + $0x79] sm:$0xff]
        %v285 = vld [vmem:[%s225 + $0x81] sm:$0xff]
        %v286 = vld [vmem:[%s225 + $0x91] sm:$0xff]
        %v287 = vld [vmem:[%s225 + $0x99] sm:$0xff]
        %v288 = vld [vmem:[%s225 + $0xa9] sm:$0xff]
        %v289 = vld [vmem:[%s225 + $0xb1] sm:$0xff]
        %v290 = vld [vmem:[%s225 + $0xc1] sm:$0xff]
        %v291 = vld [vmem:[%s225 + $0xc9] sm:$0xff]
        %v292 = vld [vmem:[%s225 + $0xd9] sm:$0xff]
        %v293 = vld [vmem:[%s225 + $0xe1] sm:$0xff]
        %v294 = vld [vmem:[%s225 + $0xf1] sm:$0xff]
        %v295 = vld [vmem:[%s225 + $0xf9] sm:$0xff]
        %v296 = vld [vmem:[%s225 + $0x109] sm:$0xff]
        %v297 = vld [vmem:[%s225 + $0x111] sm:$0xff]
        %v298 = vld [vmem:[%s225 + $0x121] sm:$0xff]
        %v299 = vld [vmem:[%s225 + $0x129] sm:$0xff]
        %v300 = vld [vmem:[%s225 + $0x139] sm:$0xff]
        %v301 = vld [vmem:[%s225 + $0x141] sm:$0xff]
        %v302 = vld [vmem:[%s225 + $0x151] sm:$0xff]
        %v303 = vld [vmem:[%s225 + $0x159] sm:$0xff]
        %v304 = vld [vmem:[%s225 + $0x169] sm:$0xff]
        %v305 = vld [vmem:[%s225 + $0x171] sm:$0xff]
        %vm309 = vcmask 1046528
        %v310 = vrot.slane %v236, 1
        %v311 = vrot.slane %v237, 1
        %v312 = vsel %vm309, %v310, %v311
        %v313 = vrot.slane %v238, 1
        %v314 = vsel %vm309, %v311, %v313
        %v320 = vrot.slane %v239, 1
        %v321 = vrot.slane %v240, 1
        %v322 = vsel %vm309, %v320, %v321
        %v323 = vrot.slane %v241, 1
        %v324 = vsel %vm309, %v321, %v323
        %v325 = vld [vmem:[%s225 + $0x2] sm:$0xff]
        %v326 = vld [vmem:[%s225 + $0xa] sm:$0xff]
        %v327 = vld [vmem:[%s225 + $0x1a] sm:$0xff]
        %v328 = vld [vmem:[%s225 + $0x22] sm:$0xff]
        %v329 = vld [vmem:[%s225 + $0x32] sm:$0xff]
        %v330 = vld [vmem:[%s225 + $0x3a] sm:$0xff]
        %v331 = vld [vmem:[%s225 + $0x4a] sm:$0xff]
        %v332 = vld [vmem:[%s225 + $0x52] sm:$0xff]
        %v333 = vld [vmem:[%s225 + $0x62] sm:$0xff]
        %v334 = vld [vmem:[%s225 + $0x6a] sm:$0xff]
        %v335 = vld [vmem:[%s225 + $0x7a] sm:$0xff]
        %v336 = vld [vmem:[%s225 + $0x82] sm:$0xff]
        %v337 = vld [vmem:[%s225 + $0x92] sm:$0xff]
        %v338 = vld [vmem:[%s225 + $0x9a] sm:$0xff]
        %v339 = vld [vmem:[%s225 + $0xaa] sm:$0xff]
        %v340 = vld [vmem:[%s225 + $0xb2] sm:$0xff]
        %v341 = vld [vmem:[%s225 + $0xc2] sm:$0xff]
        %v342 = vld [vmem:[%s225 + $0xca] sm:$0xff]
        %v343 = vld [vmem:[%s225 + $0xda] sm:$0xff]
        %v344 = vld [vmem:[%s225 + $0xe2] sm:$0xff]
        %v345 = vld [vmem:[%s225 + $0xf2] sm:$0xff]
        %v346 = vld [vmem:[%s225 + $0xfa] sm:$0xff]
        %v347 = vld [vmem:[%s225 + $0x10a] sm:$0xff]
        %v348 = vld [vmem:[%s225 + $0x112] sm:$0xff]
        %v349 = vld [vmem:[%s225 + $0x122] sm:$0xff]
        %v350 = vld [vmem:[%s225 + $0x12a] sm:$0xff]
        %v351 = vld [vmem:[%s225 + $0x13a] sm:$0xff]
        %v352 = vld [vmem:[%s225 + $0x142] sm:$0xff]
        %v353 = vld [vmem:[%s225 + $0x152] sm:$0xff]
        %v354 = vld [vmem:[%s225 + $0x15a] sm:$0xff]
        %v355 = vld [vmem:[%s225 + $0x16a] sm:$0xff]
        %v356 = vld [vmem:[%s225 + $0x172] sm:$0xff]
        %vm357 = vcmask 1045504
        %v358 = vrot.slane %v236, 2
        %v359 = vrot.slane %v237, 2
        %v360 = vsel %vm357, %v358, %v359
        %v361 = vrot.slane %v238, 2
        %v362 = vsel %vm357, %v359, %v361
        %v363 = vrot.slane %v239, 2
        %v364 = vrot.slane %v240, 2
        %v365 = vsel %vm357, %v363, %v364
        %v366 = vrot.slane %v241, 2
        %v367 = vsel %vm357, %v364, %v366
        %398 = vrot.lane.b32.xlu0 %v312, 4
        %v399 = vpop.permute.xlu0 %398
        %400 = vrot.lane.b32.xlu0 %v314, 4
        %v401 = vpop.permute.xlu0 %400
        %402 = vrot.lane.b32.xlu0 %v274, 4
        %v403 = vpop.permute.xlu0 %402
        %404 = vrot.lane.b32.xlu0 %v275, 4
        %v405 = vpop.permute.xlu0 %404
        %406 = vrot.lane.b32.xlu0 %v276, 4
        %v407 = vpop.permute.xlu0 %406
        %408 = vrot.lane.b32.xlu0 %v277, 4
        %v409 = vpop.permute.xlu0 %408
        %410 = vrot.lane.b32.xlu0 %v278, 4
        %v411 = vpop.permute.xlu0 %410
        %412 = vrot.lane.b32.xlu0 %v279, 4
        %v413 = vpop.permute.xlu0 %412
        %414 = vrot.lane.b32.xlu0 %v280, 4
        %v415 = vpop.permute.xlu0 %414
        %416 = vrot.lane.b32.xlu0 %v281, 4
        %v417 = vpop.permute.xlu0 %416
        %418 = vrot.lane.b32.xlu0 %v282, 4
        %v419 = vpop.permute.xlu0 %418
        %420 = vrot.lane.b32.xlu0 %v283, 4
        %v421 = vpop.permute.xlu0 %420
        %422 = vrot.lane.b32.xlu0 %v284, 4
        %v423 = vpop.permute.xlu0 %422
        %424 = vrot.lane.b32.xlu0 %v285, 4
        %v425 = vpop.permute.xlu0 %424
        %426 = vrot.lane.b32.xlu0 %v286, 4
        %v427 = vpop.permute.xlu0 %426
        %428 = vrot.lane.b32.xlu0 %v287, 4
        %v429 = vpop.permute.xlu0 %428
        %430 = vrot.lane.b32.xlu0 %v288, 4
        %v431 = vpop.permute.xlu0 %430
        %432 = vrot.lane.b32.xlu0 %v289, 4
        %v433 = vpop.permute.xlu0 %432
        %434 = vrot.lane.b32.xlu0 %v290, 4
        %v435 = vpop.permute.xlu0 %434
        %436 = vrot.lane.b32.xlu0 %v291, 4
        %v437 = vpop.permute.xlu0 %436
        %438 = vrot.lane.b32.xlu0 %v292, 4
        %v439 = vpop.permute.xlu0 %438
        %440 = vrot.lane.b32.xlu0 %v293, 4
        %v441 = vpop.permute.xlu0 %440
        %442 = vrot.lane.b32.xlu0 %v294, 4
        %v443 = vpop.permute.xlu0 %442
        %444 = vrot.lane.b32.xlu0 %v295, 4
        %v445 = vpop.permute.xlu0 %444
        %446 = vrot.lane.b32.xlu0 %v296, 4
        %v447 = vpop.permute.xlu0 %446
        %448 = vrot.lane.b32.xlu0 %v297, 4
        %v449 = vpop.permute.xlu0 %448
        %450 = vrot.lane.b32.xlu0 %v298, 4
        %v451 = vpop.permute.xlu0 %450
        %452 = vrot.lane.b32.xlu0 %v299, 4
        %v453 = vpop.permute.xlu0 %452
        %454 = vrot.lane.b32.xlu0 %v300, 4
        %v455 = vpop.permute.xlu0 %454
        %456 = vrot.lane.b32.xlu0 %v301, 4
        %v457 = vpop.permute.xlu0 %456
        %458 = vrot.lane.b32.xlu0 %v302, 4
        %v459 = vpop.permute.xlu0 %458
        %460 = vrot.lane.b32.xlu0 %v303, 4
        %v461 = vpop.permute.xlu0 %460
        %526 = vrot.lane.b32.xlu0 %v242, 8
        %v527 = vpop.permute.xlu0 %526
        %528 = vrot.lane.b32.xlu0 %v243, 8
        %v529 = vpop.permute.xlu0 %528
        %530 = vrot.lane.b32.xlu0 %v244, 8
        %v531 = vpop.permute.xlu0 %530
        %532 = vrot.lane.b32.xlu0 %v245, 8
        %v533 = vpop.permute.xlu0 %532
        %534 = vrot.lane.b32.xlu0 %v246, 8
        %v535 = vpop.permute.xlu0 %534
        %536 = vrot.lane.b32.xlu0 %v247, 8
        %v537 = vpop.permute.xlu0 %536
        %538 = vrot.lane.b32.xlu0 %v248, 8
        %v539 = vpop.permute.xlu0 %538
        %540 = vrot.lane.b32.xlu0 %v249, 8
        %v541 = vpop.permute.xlu0 %540
        %542 = vrot.lane.b32.xlu0 %v250, 8
        %v543 = vpop.permute.xlu0 %542
        %544 = vrot.lane.b32.xlu0 %v251, 8
        %v545 = vpop.permute.xlu0 %544
        %546 = vrot.lane.b32.xlu0 %v252, 8
        %v547 = vpop.permute.xlu0 %546
        %548 = vrot.lane.b32.xlu0 %v253, 8
        %v549 = vpop.permute.xlu0 %548
        %550 = vrot.lane.b32.xlu0 %v254, 8
        %v551 = vpop.permute.xlu0 %550
        %552 = vrot.lane.b32.xlu0 %v255, 8
        %v553 = vpop.permute.xlu0 %552
        %554 = vrot.lane.b32.xlu0 %v256, 8
        %v555 = vpop.permute.xlu0 %554
        %556 = vrot.lane.b32.xlu0 %v257, 8
        %v557 = vpop.permute.xlu0 %556
        %558 = vrot.lane.b32.xlu0 %v258, 8
        %v559 = vpop.permute.xlu0 %558
        %560 = vrot.lane.b32.xlu0 %v259, 8
        %v561 = vpop.permute.xlu0 %560
        %562 = vrot.lane.b32.xlu0 %v260, 8
        %v563 = vpop.permute.xlu0 %562
        %564 = vrot.lane.b32.xlu0 %v261, 8
        %v565 = vpop.permute.xlu0 %564
        %566 = vrot.lane.b32.xlu0 %v262, 8
        %v567 = vpop.permute.xlu0 %566
        %568 = vrot.lane.b32.xlu0 %v263, 8
        %v569 = vpop.permute.xlu0 %568
        %570 = vrot.lane.b32.xlu0 %v264, 8
        %v571 = vpop.permute.xlu0 %570
        %572 = vrot.lane.b32.xlu0 %v265, 8
        %v573 = vpop.permute.xlu0 %572
        %574 = vrot.lane.b32.xlu0 %v266, 8
        %v575 = vpop.permute.xlu0 %574
        %576 = vrot.lane.b32.xlu0 %v267, 8
        %v577 = vpop.permute.xlu0 %576
        %578 = vrot.lane.b32.xlu0 %v268, 8
        %v579 = vpop.permute.xlu0 %578
        %580 = vrot.lane.b32.xlu0 %v269, 8
        %v581 = vpop.permute.xlu0 %580
        %582 = vrot.lane.b32.xlu0 %v270, 8
        %v583 = vpop.permute.xlu0 %582
        %584 = vrot.lane.b32.xlu0 %v271, 8
        %v585 = vpop.permute.xlu0 %584
        %586 = vrot.lane.b32.xlu0 %v272, 8
        %v587 = vpop.permute.xlu0 %586
        %588 = vrot.lane.b32.xlu0 %v273, 8
        %v589 = vpop.permute.xlu0 %588
        %624 = vrot.lane.b32.xlu0 %v274, 12
        %v625 = vpop.permute.xlu0 %624
        %626 = vrot.lane.b32.xlu0 %v275, 12
        %v627 = vpop.permute.xlu0 %626
        %628 = vrot.lane.b32.xlu0 %v276, 12
        %v629 = vpop.permute.xlu0 %628
        %630 = vrot.lane.b32.xlu0 %v277, 12
        %v631 = vpop.permute.xlu0 %630
        %632 = vrot.lane.b32.xlu0 %v278, 12
        %v633 = vpop.permute.xlu0 %632
        %634 = vrot.lane.b32.xlu0 %v279, 12
        %v635 = vpop.permute.xlu0 %634
        %636 = vrot.lane.b32.xlu0 %v280, 12
        %v637 = vpop.permute.xlu0 %636
        %638 = vrot.lane.b32.xlu0 %v281, 12
        %v639 = vpop.permute.xlu0 %638
        %640 = vrot.lane.b32.xlu0 %v282, 12
        %v641 = vpop.permute.xlu0 %640
        %642 = vrot.lane.b32.xlu0 %v283, 12
        %v643 = vpop.permute.xlu0 %642
        %644 = vrot.lane.b32.xlu0 %v284, 12
        %v645 = vpop.permute.xlu0 %644
        %646 = vrot.lane.b32.xlu0 %v285, 12
        %v647 = vpop.permute.xlu0 %646
        %648 = vrot.lane.b32.xlu0 %v286, 12
        %v649 = vpop.permute.xlu0 %648
        %650 = vrot.lane.b32.xlu0 %v287, 12
        %v651 = vpop.permute.xlu0 %650
        %652 = vrot.lane.b32.xlu0 %v288, 12
        %v653 = vpop.permute.xlu0 %652
        %654 = vrot.lane.b32.xlu0 %v289, 12
        %v655 = vpop.permute.xlu0 %654
        %656 = vrot.lane.b32.xlu0 %v290, 12
        %v657 = vpop.permute.xlu0 %656
        %658 = vrot.lane.b32.xlu0 %v291, 12
        %v659 = vpop.permute.xlu0 %658
        %660 = vrot.lane.b32.xlu0 %v292, 12
        %v661 = vpop.permute.xlu0 %660
        %662 = vrot.lane.b32.xlu0 %v293, 12
        %v663 = vpop.permute.xlu0 %662
        %664 = vrot.lane.b32.xlu0 %v294, 12
        %v665 = vpop.permute.xlu0 %664
        %666 = vrot.lane.b32.xlu0 %v295, 12
        %v667 = vpop.permute.xlu0 %666
        %668 = vrot.lane.b32.xlu0 %v296, 12
        %v669 = vpop.permute.xlu0 %668
        %670 = vrot.lane.b32.xlu0 %v297, 12
        %v671 = vpop.permute.xlu0 %670
        %672 = vrot.lane.b32.xlu0 %v298, 12
        %v673 = vpop.permute.xlu0 %672
        %674 = vrot.lane.b32.xlu0 %v299, 12
        %v675 = vpop.permute.xlu0 %674
        %676 = vrot.lane.b32.xlu0 %v300, 12
        %v677 = vpop.permute.xlu0 %676
        %678 = vrot.lane.b32.xlu0 %v301, 12
        %v679 = vpop.permute.xlu0 %678
        %680 = vrot.lane.b32.xlu0 %v302, 12
        %v681 = vpop.permute.xlu0 %680
        %682 = vrot.lane.b32.xlu0 %v303, 12
        %v683 = vpop.permute.xlu0 %682
        %684 = vrot.lane.b32.xlu0 %v304, 12
        %v685 = vpop.permute.xlu0 %684
        %686 = vrot.lane.b32.xlu0 %v305, 12
        %v687 = vpop.permute.xlu0 %686
        %vm720 = vcmask 31744
        %v721 = vsel %vm720, %v236, %v399
        %v722 = vsel %vm720, %v237, %v401
        %v723 = vsel %vm720, %v242, %v403
        %v724 = vsel %vm720, %v243, %v405
        %v725 = vsel %vm720, %v244, %v407
        %v726 = vsel %vm720, %v245, %v409
        %v727 = vsel %vm720, %v246, %v411
        %v728 = vsel %vm720, %v247, %v413
        %v729 = vsel %vm720, %v248, %v415
        %v730 = vsel %vm720, %v249, %v417
        %v731 = vsel %vm720, %v250, %v419
        %v732 = vsel %vm720, %v251, %v421
        %v733 = vsel %vm720, %v252, %v423
        %v734 = vsel %vm720, %v253, %v425
        %v735 = vsel %vm720, %v254, %v427
        %v736 = vsel %vm720, %v255, %v429
        %v737 = vsel %vm720, %v256, %v431
        %v738 = vsel %vm720, %v257, %v433
        %v739 = vsel %vm720, %v258, %v435
        %v740 = vsel %vm720, %v259, %v437
        %v741 = vsel %vm720, %v260, %v439
        %v742 = vsel %vm720, %v261, %v441
        %v743 = vsel %vm720, %v262, %v443
        %v744 = vsel %vm720, %v263, %v445
        %v745 = vsel %vm720, %v264, %v447
        %v746 = vsel %vm720, %v265, %v449
        %v747 = vsel %vm720, %v266, %v451
        %v748 = vsel %vm720, %v267, %v453
        %v749 = vsel %vm720, %v268, %v455
        %v750 = vsel %vm720, %v269, %v457
        %v751 = vsel %vm720, %v270, %v459
        %v752 = vsel %vm720, %v271, %v461
        %vm753 = vcmask 64512
        %v754 = vsel %vm753, %v721, %v527
        %v755 = vsel %vm753, %v722, %v529
        %v756 = vsel %vm753, %v723, %v531
        %v757 = vsel %vm753, %v724, %v533
        %v758 = vsel %vm753, %v725, %v535
        %v759 = vsel %vm753, %v726, %v537
        %v760 = vsel %vm753, %v727, %v539
        %v761 = vsel %vm753, %v728, %v541
        %v762 = vsel %vm753, %v729, %v543
        %v763 = vsel %vm753, %v730, %v545
        %v764 = vsel %vm753, %v731, %v547
        %v765 = vsel %vm753, %v732, %v549
        %v766 = vsel %vm753, %v733, %v551
        %v767 = vsel %vm753, %v734, %v553
        %v768 = vsel %vm753, %v735, %v555
        %v769 = vsel %vm753, %v736, %v557
        %v770 = vsel %vm753, %v737, %v559
        %v771 = vsel %vm753, %v738, %v561
        %v772 = vsel %vm753, %v739, %v563
        %v773 = vsel %vm753, %v740, %v565
        %v774 = vsel %vm753, %v741, %v567
        %v775 = vsel %vm753, %v742, %v569
        %v776 = vsel %vm753, %v743, %v571
        %v777 = vsel %vm753, %v744, %v573
        %v778 = vsel %vm753, %v745, %v575
        %v779 = vsel %vm753, %v746, %v577
        %v780 = vsel %vm753, %v747, %v579
        %v781 = vsel %vm753, %v748, %v581
        %v782 = vsel %vm753, %v749, %v583
        %v783 = vsel %vm753, %v750, %v585
        %v784 = vsel %vm753, %v751, %v587
        %v785 = vsel %vm753, %v752, %v589
        %vm786 = vcmask 97280
        %v787 = vsel %vm786, %v754, %v625
        %v788 = vsel %vm786, %v755, %v627
        %v789 = vsel %vm786, %v756, %v629
        %v790 = vsel %vm786, %v757, %v631
        %v791 = vsel %vm786, %v758, %v633
        %v792 = vsel %vm786, %v759, %v635
        %v793 = vsel %vm786, %v760, %v637
        %v794 = vsel %vm786, %v761, %v639
        %v795 = vsel %vm786, %v762, %v641
        %v796 = vsel %vm786, %v763, %v643
        %v797 = vsel %vm786, %v764, %v645
        %v798 = vsel %vm786, %v765, %v647
        %v799 = vsel %vm786, %v766, %v649
        %v800 = vsel %vm786, %v767, %v651
        %v801 = vsel %vm786, %v768, %v653
        %v802 = vsel %vm786, %v769, %v655
        %v803 = vsel %vm786, %v770, %v657
        %v804 = vsel %vm786, %v771, %v659
        %v805 = vsel %vm786, %v772, %v661
        %v806 = vsel %vm786, %v773, %v663
        %v807 = vsel %vm786, %v774, %v665
        %v808 = vsel %vm786, %v775, %v667
        %v809 = vsel %vm786, %v776, %v669
        %v810 = vsel %vm786, %v777, %v671
        %v811 = vsel %vm786, %v778, %v673
        %v812 = vsel %vm786, %v779, %v675
        %v813 = vsel %vm786, %v780, %v677
        %v814 = vsel %vm786, %v781, %v679
        %v815 = vsel %vm786, %v782, %v681
        %v816 = vsel %vm786, %v783, %v683
        %v817 = vsel %vm786, %v784, %v685
        %v818 = vsel %vm786, %v785, %v687
        %v819 = vld [vmem:[%s2] sm:$0xff]
        %v820 = vld [vmem:[%s2 + $0x8] sm:$0xff]
        %vm821 = vcmask 130048
        %v823 = vsel %vm821, %v787, 0
        %v826 = vsel %vm821, %v788, 0
        %v829 = vsel %vm821, %v789, 0
        %v832 = vsel %vm821, %v790, 0
        %v835 = vsel %vm821, %v791, 0
        %v838 = vsel %vm821, %v792, 0
        %v841 = vsel %vm821, %v793, 0
        %v844 = vsel %vm821, %v794, 0
        %v847 = vsel %vm821, %v795, 0
        %v850 = vsel %vm821, %v796, 0
        %v853 = vsel %vm821, %v797, 0
        %v856 = vsel %vm821, %v798, 0
        %v859 = vsel %vm821, %v799, 0
        %v862 = vsel %vm821, %v800, 0
        %v865 = vsel %vm821, %v801, 0
        %v868 = vsel %vm821, %v802, 0
        %v871 = vsel %vm821, %v803, 0
        %v874 = vsel %vm821, %v804, 0
        %v877 = vsel %vm821, %v805, 0
        %v880 = vsel %vm821, %v806, 0
        %v883 = vsel %vm821, %v807, 0
        %v886 = vsel %vm821, %v808, 0
        %v889 = vsel %vm821, %v809, 0
        %v892 = vsel %vm821, %v810, 0
        %v895 = vsel %vm821, %v811, 0
        %v898 = vsel %vm821, %v812, 0
        %v901 = vsel %vm821, %v813, 0
        %v904 = vsel %vm821, %v814, 0
        %v907 = vsel %vm821, %v815, 0
        %v910 = vsel %vm821, %v816, 0
        %v913 = vsel %vm821, %v817, 0
        %v916 = vsel %vm821, %v818, 0
        %918 = vmatpush.msra.mxu0 0.0
        %919 = vmatpush.msra.mxu0 0.0
        %920 = vmatpush.msra.mxu0 0.0
        %921 = vmatpush.msra.mxu0 0.0
        %922 = vmatpush.msra.mxu0 0.0
        %923 = vmatpush.msra.mxu0 0.0
        %924 = vmatpush.msra.mxu0 0.0
        %925 = vmatpush.msra.mxu0 0.0
        %926 = vmatpush.msra.mxu0 0.0
        %927 = vmatpush.msra.mxu0 0.0
        %928 = vmatpush.msra.mxu0 0.0
        %929 = vmatpush.msra.mxu0 0.0
        %930 = vmatpush.msra.mxu0 0.0
        %931 = vmatpush.msra.mxu0 0.0
        %932 = vmatpush.msra.mxu0 %v820
        %933 = vmatpush.msra.mxu0 %v819
        %934 = vmatmul.f32.gmra.mxu0 %v823
        %v935 = vpop.f32.mrf.mxu0
        %v936 = vadd.f32 0.0, %v935
        %937 = vmatmul.f32.gmra.mxu0 %v826
        %v938 = vpop.f32.mrf.mxu0
        %v939 = vadd.f32 0.0, %v938
        %940 = vmatmul.f32.gmra.mxu0 %v829
        %v941 = vpop.f32.mrf.mxu0
        %v942 = vadd.f32 0.0, %v941
        %943 = vmatmul.f32.gmra.mxu0 %v832
        %v944 = vpop.f32.mrf.mxu0
        %v945 = vadd.f32 0.0, %v944
        %946 = vmatmul.f32.gmra.mxu0 %v835
        %v947 = vpop.f32.mrf.mxu0
        %v948 = vadd.f32 0.0, %v947
        %949 = vmatmul.f32.gmra.mxu0 %v838
        %v950 = vpop.f32.mrf.mxu0
        %v951 = vadd.f32 0.0, %v950
        %952 = vmatmul.f32.gmra.mxu0 %v841
        %v953 = vpop.f32.mrf.mxu0
        %v954 = vadd.f32 0.0, %v953
        %955 = vmatmul.f32.gmra.mxu0 %v844
        %v956 = vpop.f32.mrf.mxu0
        %v957 = vadd.f32 0.0, %v956
        %958 = vmatmul.f32.gmra.mxu0 %v847
        %v959 = vpop.f32.mrf.mxu0
        %v960 = vadd.f32 0.0, %v959
        %961 = vmatmul.f32.gmra.mxu0 %v850
        %v962 = vpop.f32.mrf.mxu0
        %v963 = vadd.f32 0.0, %v962
        %964 = vmatmul.f32.gmra.mxu0 %v853
        %v965 = vpop.f32.mrf.mxu0
        %v966 = vadd.f32 0.0, %v965
        %967 = vmatmul.f32.gmra.mxu0 %v856
        %v968 = vpop.f32.mrf.mxu0
        %v969 = vadd.f32 0.0, %v968
        %970 = vmatmul.f32.gmra.mxu0 %v859
        %v971 = vpop.f32.mrf.mxu0
        %v972 = vadd.f32 0.0, %v971
        %973 = vmatmul.f32.gmra.mxu0 %v862
        %v974 = vpop.f32.mrf.mxu0
        %v975 = vadd.f32 0.0, %v974
        %976 = vmatmul.f32.gmra.mxu0 %v865
        %v977 = vpop.f32.mrf.mxu0
        %v978 = vadd.f32 0.0, %v977
        %979 = vmatmul.f32.gmra.mxu0 %v868
        %v980 = vpop.f32.mrf.mxu0
        %v981 = vadd.f32 0.0, %v980
        %982 = vmatmul.f32.gmra.mxu0 %v871
        %v983 = vpop.f32.mrf.mxu0
        %v984 = vadd.f32 0.0, %v983
        %985 = vmatmul.f32.gmra.mxu0 %v874
        %v986 = vpop.f32.mrf.mxu0
        %v987 = vadd.f32 0.0, %v986
        %988 = vmatmul.f32.gmra.mxu0 %v877
        %v989 = vpop.f32.mrf.mxu0
        %v990 = vadd.f32 0.0, %v989
        %991 = vmatmul.f32.gmra.mxu0 %v880
        %v992 = vpop.f32.mrf.mxu0
        %v993 = vadd.f32 0.0, %v992
        %994 = vmatmul.f32.gmra.mxu0 %v883
        %v995 = vpop.f32.mrf.mxu0
        %v996 = vadd.f32 0.0, %v995
        %997 = vmatmul.f32.gmra.mxu0 %v886
        %v998 = vpop.f32.mrf.mxu0
        %v999 = vadd.f32 0.0, %v998
        %1000 = vmatmul.f32.gmra.mxu0 %v889
        %v1001 = vpop.f32.mrf.mxu0
        %v1002 = vadd.f32 0.0, %v1001
        %1003 = vmatmul.f32.gmra.mxu0 %v892
        %v1004 = vpop.f32.mrf.mxu0
        %v1005 = vadd.f32 0.0, %v1004
        %1006 = vmatmul.f32.gmra.mxu0 %v895
        %v1007 = vpop.f32.mrf.mxu0
        %v1008 = vadd.f32 0.0, %v1007
        %1009 = vmatmul.f32.gmra.mxu0 %v898
        %v1010 = vpop.f32.mrf.mxu0
        %v1011 = vadd.f32 0.0, %v1010
        %1012 = vmatmul.f32.gmra.mxu0 %v901
        %v1013 = vpop.f32.mrf.mxu0
        %v1014 = vadd.f32 0.0, %v1013
        %1015 = vmatmul.f32.gmra.mxu0 %v904
        %v1016 = vpop.f32.mrf.mxu0
        %v1017 = vadd.f32 0.0, %v1016
        %1018 = vmatmul.f32.gmra.mxu0 %v907
        %v1019 = vpop.f32.mrf.mxu0
        %v1020 = vadd.f32 0.0, %v1019
        %1021 = vmatmul.f32.gmra.mxu0 %v910
        %v1022 = vpop.f32.mrf.mxu0
        %v1023 = vadd.f32 0.0, %v1022
        %1024 = vmatmul.f32.gmra.mxu0 %v913
        %v1025 = vpop.f32.mrf.mxu0
        %v1026 = vadd.f32 0.0, %v1025
        %1027 = vmatmul.f32.gmra.mxu0 %v916
        %v1028 = vpop.f32.mrf.mxu0
        %v1029 = vadd.f32 0.0, %v1028
        %1030 = vdwg.mxu0
        %v1031 = vsel %vm753, %v936, 0.0
        %v1032 = vsel %vm753, %v939, 0.0
        %v1033 = vadd.f32 %v1031, %v1032
        %v1034 = vsel %vm753, %v942, 0.0
        %v1035 = vadd.f32 %v1033, %v1034
        %v1036 = vsel %vm753, %v945, 0.0
        %v1037 = vadd.f32 %v1035, %v1036
        %v1038 = vsel %vm753, %v948, 0.0
        %v1039 = vadd.f32 %v1037, %v1038
        %v1040 = vsel %vm753, %v951, 0.0
        %v1041 = vadd.f32 %v1039, %v1040
        %v1042 = vsel %vm753, %v954, 0.0
        %v1043 = vadd.f32 %v1041, %v1042
        %v1044 = vsel %vm753, %v957, 0.0
        %v1045 = vadd.f32 %v1043, %v1044
        %v1046 = vsel %vm753, %v960, 0.0
        %v1047 = vadd.f32 %v1045, %v1046
        %v1048 = vsel %vm753, %v963, 0.0
        %v1049 = vadd.f32 %v1047, %v1048
        %v1050 = vsel %vm753, %v966, 0.0
        %v1051 = vadd.f32 %v1049, %v1050
        %v1052 = vsel %vm753, %v969, 0.0
        %v1053 = vadd.f32 %v1051, %v1052
        %v1054 = vsel %vm753, %v972, 0.0
        %v1055 = vadd.f32 %v1053, %v1054
        %v1056 = vsel %vm753, %v975, 0.0
        %v1057 = vadd.f32 %v1055, %v1056
        %v1058 = vsel %vm753, %v978, 0.0
        %v1059 = vadd.f32 %v1057, %v1058
        %v1060 = vsel %vm753, %v981, 0.0
        %v1061 = vadd.f32 %v1059, %v1060
        %v1062 = vsel %vm753, %v984, 0.0
        %v1063 = vadd.f32 %v1061, %v1062
        %v1064 = vsel %vm753, %v987, 0.0
        %v1065 = vadd.f32 %v1063, %v1064
        %v1066 = vsel %vm753, %v990, 0.0
        %v1067 = vadd.f32 %v1065, %v1066
        %v1068 = vsel %vm753, %v993, 0.0
        %v1069 = vadd.f32 %v1067, %v1068
        %v1070 = vsel %vm753, %v996, 0.0
        %v1071 = vadd.f32 %v1069, %v1070
        %v1072 = vsel %vm753, %v999, 0.0
        %v1073 = vadd.f32 %v1071, %v1072
        %v1074 = vsel %vm753, %v1002, 0.0
        %v1075 = vadd.f32 %v1073, %v1074
        %v1076 = vsel %vm753, %v1005, 0.0
        %v1077 = vadd.f32 %v1075, %v1076
        %v1078 = vsel %vm753, %v1008, 0.0
        %v1079 = vadd.f32 %v1077, %v1078
        %v1080 = vsel %vm753, %v1011, 0.0
        %v1081 = vadd.f32 %v1079, %v1080
        %v1082 = vsel %vm753, %v1014, 0.0
        %v1083 = vadd.f32 %v1081, %v1082
        %v1084 = vsel %vm753, %v1017, 0.0
        %v1085 = vadd.f32 %v1083, %v1084
        %v1086 = vsel %vm753, %v1020, 0.0
        %v1087 = vadd.f32 %v1085, %v1086
        %v1088 = vsel %vm753, %v1023, 0.0
        %v1089 = vadd.f32 %v1087, %v1088
        %v1090 = vsel %vm753, %v1026, 0.0
        %v1091 = vadd.f32 %v1089, %v1090
        %v1092 = vsel %vm753, %v1029, 0.0
        %v1093 = vadd.f32 %v1091, %v1092
        %v1094 = vrot.slane %v1093, 4
        %v1095 = vadd.f32 %v1093, %v1094
        %v1096 = vrot.slane %v1095, 2
        %v1097 = vadd.f32 %v1095, %v1096
        %v1098 = vrot.slane %v1097, 1
        %v1099 = vadd.f32 %v1097, %v1098
        %v1100 = vmul.f32 %v1099, 0.00390625
        %v1101 = vsub.f32 %v936, %v1100
        %v1102 = vsub.f32 %v939, %v1100
        %v1103 = vsub.f32 %v942, %v1100
        %v1104 = vsub.f32 %v945, %v1100
        %v1105 = vsub.f32 %v948, %v1100
        %v1106 = vsub.f32 %v951, %v1100
        %v1107 = vsub.f32 %v954, %v1100
        %v1108 = vsub.f32 %v957, %v1100
        %v1109 = vsub.f32 %v960, %v1100
        %v1110 = vsub.f32 %v963, %v1100
        %v1111 = vsub.f32 %v966, %v1100
        %v1112 = vsub.f32 %v969, %v1100
        %v1113 = vsub.f32 %v972, %v1100
        %v1114 = vsub.f32 %v975, %v1100
        %v1115 = vsub.f32 %v978, %v1100
        %v1116 = vsub.f32 %v981, %v1100
        %v1117 = vsub.f32 %v984, %v1100
        %v1118 = vsub.f32 %v987, %v1100
        %v1119 = vsub.f32 %v990, %v1100
        %v1120 = vsub.f32 %v993, %v1100
        %v1121 = vsub.f32 %v996, %v1100
        %v1122 = vsub.f32 %v999, %v1100
        %v1123 = vsub.f32 %v1002, %v1100
        %v1124 = vsub.f32 %v1005, %v1100
        %v1125 = vsub.f32 %v1008, %v1100
        %v1126 = vsub.f32 %v1011, %v1100
        %v1127 = vsub.f32 %v1014, %v1100
        %v1128 = vsub.f32 %v1017, %v1100
        %v1129 = vsub.f32 %v1020, %v1100
        %v1130 = vsub.f32 %v1023, %v1100
        %v1131 = vsub.f32 %v1026, %v1100
        %v1132 = vsub.f32 %v1029, %v1100
        %v1133 = vmul.f32 %v1101, %v1101
        %v1134 = vmul.f32 %v1102, %v1102
        %v1135 = vmul.f32 %v1103, %v1103
        %v1136 = vmul.f32 %v1104, %v1104
        %v1137 = vmul.f32 %v1105, %v1105
        %v1138 = vmul.f32 %v1106, %v1106
        %v1139 = vmul.f32 %v1107, %v1107
        %v1140 = vmul.f32 %v1108, %v1108
        %v1141 = vmul.f32 %v1109, %v1109
        %v1142 = vmul.f32 %v1110, %v1110
        %v1143 = vmul.f32 %v1111, %v1111
        %v1144 = vmul.f32 %v1112, %v1112
        %v1145 = vmul.f32 %v1113, %v1113
        %v1146 = vmul.f32 %v1114, %v1114
        %v1147 = vmul.f32 %v1115, %v1115
        %v1148 = vmul.f32 %v1116, %v1116
        %v1149 = vmul.f32 %v1117, %v1117
        %v1150 = vmul.f32 %v1118, %v1118
        %v1151 = vmul.f32 %v1119, %v1119
        %v1152 = vmul.f32 %v1120, %v1120
        %v1153 = vmul.f32 %v1121, %v1121
        %v1154 = vmul.f32 %v1122, %v1122
        %v1155 = vmul.f32 %v1123, %v1123
        %v1156 = vmul.f32 %v1124, %v1124
        %v1157 = vmul.f32 %v1125, %v1125
        %v1158 = vmul.f32 %v1126, %v1126
        %v1159 = vmul.f32 %v1127, %v1127
        %v1160 = vmul.f32 %v1128, %v1128
        %v1161 = vmul.f32 %v1129, %v1129
        %v1162 = vmul.f32 %v1130, %v1130
        %v1163 = vmul.f32 %v1131, %v1131
        %v1164 = vmul.f32 %v1132, %v1132
        %v1165 = vsel %vm753, %v1133, 0.0
        %v1166 = vsel %vm753, %v1134, 0.0
        %v1167 = vadd.f32 %v1165, %v1166
        %v1168 = vsel %vm753, %v1135, 0.0
        %v1169 = vadd.f32 %v1167, %v1168
        %v1170 = vsel %vm753, %v1136, 0.0
        %v1171 = vadd.f32 %v1169, %v1170
        %v1172 = vsel %vm753, %v1137, 0.0
        %v1173 = vadd.f32 %v1171, %v1172
        %v1174 = vsel %vm753, %v1138, 0.0
        %v1175 = vadd.f32 %v1173, %v1174
        %v1176 = vsel %vm753, %v1139, 0.0
        %v1177 = vadd.f32 %v1175, %v1176
        %v1178 = vsel %vm753, %v1140, 0.0
        %v1179 = vadd.f32 %v1177, %v1178
        %v1180 = vsel %vm753, %v1141, 0.0
        %v1181 = vadd.f32 %v1179, %v1180
        %v1182 = vsel %vm753, %v1142, 0.0
        %v1183 = vadd.f32 %v1181, %v1182
        %v1184 = vsel %vm753, %v1143, 0.0
        %v1185 = vadd.f32 %v1183, %v1184
        %v1186 = vsel %vm753, %v1144, 0.0
        %v1187 = vadd.f32 %v1185, %v1186
        %v1188 = vsel %vm753, %v1145, 0.0
        %v1189 = vadd.f32 %v1187, %v1188
        %v1190 = vsel %vm753, %v1146, 0.0
        %v1191 = vadd.f32 %v1189, %v1190
        %v1192 = vsel %vm753, %v1147, 0.0
        %v1193 = vadd.f32 %v1191, %v1192
        %v1194 = vsel %vm753, %v1148, 0.0
        %v1195 = vadd.f32 %v1193, %v1194
        %v1196 = vsel %vm753, %v1149, 0.0
        %v1197 = vadd.f32 %v1195, %v1196
        %v1198 = vsel %vm753, %v1150, 0.0
        %v1199 = vadd.f32 %v1197, %v1198
        %v1200 = vsel %vm753, %v1151, 0.0
        %v1201 = vadd.f32 %v1199, %v1200
        %v1202 = vsel %vm753, %v1152, 0.0
        %v1203 = vadd.f32 %v1201, %v1202
        %v1204 = vsel %vm753, %v1153, 0.0
        %v1205 = vadd.f32 %v1203, %v1204
        %v1206 = vsel %vm753, %v1154, 0.0
        %v1207 = vadd.f32 %v1205, %v1206
        %v1208 = vsel %vm753, %v1155, 0.0
        %v1209 = vadd.f32 %v1207, %v1208
        %v1210 = vsel %vm753, %v1156, 0.0
        %v1211 = vadd.f32 %v1209, %v1210
        %v1212 = vsel %vm753, %v1157, 0.0
        %v1213 = vadd.f32 %v1211, %v1212
        %v1214 = vsel %vm753, %v1158, 0.0
        %v1215 = vadd.f32 %v1213, %v1214
        %v1216 = vsel %vm753, %v1159, 0.0
        %v1217 = vadd.f32 %v1215, %v1216
        %v1218 = vsel %vm753, %v1160, 0.0
        %v1219 = vadd.f32 %v1217, %v1218
        %v1220 = vsel %vm753, %v1161, 0.0
        %v1221 = vadd.f32 %v1219, %v1220
        %v1222 = vsel %vm753, %v1162, 0.0
        %v1223 = vadd.f32 %v1221, %v1222
        %v1224 = vsel %vm753, %v1163, 0.0
        %v1225 = vadd.f32 %v1223, %v1224
        %v1226 = vsel %vm753, %v1164, 0.0
        %v1227 = vadd.f32 %v1225, %v1226
        %v1228 = vrot.slane %v1227, 4
        %v1229 = vadd.f32 %v1227, %v1228
        %v1230 = vrot.slane %v1229, 2
        %v1231 = vadd.f32 %v1229, %v1230
        %v1232 = vrot.slane %v1231, 1
        %v1233 = vadd.f32 %v1231, %v1232
        %1264 = vrot.lane.b32.xlu0 %v360, 4
        %v1265 = vpop.permute.xlu0 %1264
        %1266 = vrot.lane.b32.xlu0 %v362, 4
        %v1267 = vpop.permute.xlu0 %1266
        %1268 = vrot.lane.b32.xlu0 %v325, 4
        %v1269 = vpop.permute.xlu0 %1268
        %1270 = vrot.lane.b32.xlu0 %v326, 4
        %v1271 = vpop.permute.xlu0 %1270
        %1272 = vrot.lane.b32.xlu0 %v327, 4
        %v1273 = vpop.permute.xlu0 %1272
        %1274 = vrot.lane.b32.xlu0 %v328, 4
        %v1275 = vpop.permute.xlu0 %1274
        %1276 = vrot.lane.b32.xlu0 %v329, 4
        %v1277 = vpop.permute.xlu0 %1276
        %1278 = vrot.lane.b32.xlu0 %v330, 4
        %v1279 = vpop.permute.xlu0 %1278
        %1280 = vrot.lane.b32.xlu0 %v331, 4
        %v1281 = vpop.permute.xlu0 %1280
        %1282 = vrot.lane.b32.xlu0 %v332, 4
        %v1283 = vpop.permute.xlu0 %1282
        %1284 = vrot.lane.b32.xlu0 %v333, 4
        %v1285 = vpop.permute.xlu0 %1284
        %1286 = vrot.lane.b32.xlu0 %v334, 4
        %v1287 = vpop.permute.xlu0 %1286
        %1288 = vrot.lane.b32.xlu0 %v335, 4
        %v1289 = vpop.permute.xlu0 %1288
        %1290 = vrot.lane.b32.xlu0 %v336, 4
        %v1291 = vpop.permute.xlu0 %1290
        %1292 = vrot.lane.b32.xlu0 %v337, 4
        %v1293 = vpop.permute.xlu0 %1292
        %1294 = vrot.lane.b32.xlu0 %v338, 4
        %v1295 = vpop.permute.xlu0 %1294
        %1296 = vrot.lane.b32.xlu0 %v339, 4
        %v1297 = vpop.permute.xlu0 %1296
        %1298 = vrot.lane.b32.xlu0 %v340, 4
        %v1299 = vpop.permute.xlu0 %1298
        %1300 = vrot.lane.b32.xlu0 %v341, 4
        %v1301 = vpop.permute.xlu0 %1300
        %1302 = vrot.lane.b32.xlu0 %v342, 4
        %v1303 = vpop.permute.xlu0 %1302
        %1304 = vrot.lane.b32.xlu0 %v343, 4
        %v1305 = vpop.permute.xlu0 %1304
        %1306 = vrot.lane.b32.xlu0 %v344, 4
        %v1307 = vpop.permute.xlu0 %1306
        %1308 = vrot.lane.b32.xlu0 %v345, 4
        %v1309 = vpop.permute.xlu0 %1308
        %1310 = vrot.lane.b32.xlu0 %v346, 4
        %v1311 = vpop.permute.xlu0 %1310
        %1312 = vrot.lane.b32.xlu0 %v347, 4
        %v1313 = vpop.permute.xlu0 %1312
        %1314 = vrot.lane.b32.xlu0 %v348, 4
        %v1315 = vpop.permute.xlu0 %1314
        %1316 = vrot.lane.b32.xlu0 %v349, 4
        %v1317 = vpop.permute.xlu0 %1316
        %1318 = vrot.lane.b32.xlu0 %v350, 4
        %v1319 = vpop.permute.xlu0 %1318
        %1320 = vrot.lane.b32.xlu0 %v351, 4
        %v1321 = vpop.permute.xlu0 %1320
        %1322 = vrot.lane.b32.xlu0 %v352, 4
        %v1323 = vpop.permute.xlu0 %1322
        %1324 = vrot.lane.b32.xlu0 %v353, 4
        %v1325 = vpop.permute.xlu0 %1324
        %1326 = vrot.lane.b32.xlu0 %v354, 4
        %v1327 = vpop.permute.xlu0 %1326
        %1360 = vrot.lane.b32.xlu0 %v274, 8
        %v1361 = vpop.permute.xlu0 %1360
        %1362 = vrot.lane.b32.xlu0 %v275, 8
        %v1363 = vpop.permute.xlu0 %1362
        %1364 = vrot.lane.b32.xlu0 %v276, 8
        %v1365 = vpop.permute.xlu0 %1364
        %1366 = vrot.lane.b32.xlu0 %v277, 8
        %v1367 = vpop.permute.xlu0 %1366
        %1368 = vrot.lane.b32.xlu0 %v278, 8
        %v1369 = vpop.permute.xlu0 %1368
        %1370 = vrot.lane.b32.xlu0 %v279, 8
        %v1371 = vpop.permute.xlu0 %1370
        %1372 = vrot.lane.b32.xlu0 %v280, 8
        %v1373 = vpop.permute.xlu0 %1372
        %1374 = vrot.lane.b32.xlu0 %v281, 8
        %v1375 = vpop.permute.xlu0 %1374
        %1376 = vrot.lane.b32.xlu0 %v282, 8
        %v1377 = vpop.permute.xlu0 %1376
        %1378 = vrot.lane.b32.xlu0 %v283, 8
        %v1379 = vpop.permute.xlu0 %1378
        %1380 = vrot.lane.b32.xlu0 %v284, 8
        %v1381 = vpop.permute.xlu0 %1380
        %1382 = vrot.lane.b32.xlu0 %v285, 8
        %v1383 = vpop.permute.xlu0 %1382
        %1384 = vrot.lane.b32.xlu0 %v286, 8
        %v1385 = vpop.permute.xlu0 %1384
        %1386 = vrot.lane.b32.xlu0 %v287, 8
        %v1387 = vpop.permute.xlu0 %1386
        %1388 = vrot.lane.b32.xlu0 %v288, 8
        %v1389 = vpop.permute.xlu0 %1388
        %1390 = vrot.lane.b32.xlu0 %v289, 8
        %v1391 = vpop.permute.xlu0 %1390
        %1392 = vrot.lane.b32.xlu0 %v290, 8
        %v1393 = vpop.permute.xlu0 %1392
        %1394 = vrot.lane.b32.xlu0 %v291, 8
        %v1395 = vpop.permute.xlu0 %1394
        %1396 = vrot.lane.b32.xlu0 %v292, 8
        %v1397 = vpop.permute.xlu0 %1396
        %1398 = vrot.lane.b32.xlu0 %v293, 8
        %v1399 = vpop.permute.xlu0 %1398
        %1400 = vrot.lane.b32.xlu0 %v294, 8
        %v1401 = vpop.permute.xlu0 %1400
        %1402 = vrot.lane.b32.xlu0 %v295, 8
        %v1403 = vpop.permute.xlu0 %1402
        %1404 = vrot.lane.b32.xlu0 %v296, 8
        %v1405 = vpop.permute.xlu0 %1404
        %1406 = vrot.lane.b32.xlu0 %v297, 8
        %v1407 = vpop.permute.xlu0 %1406
        %1408 = vrot.lane.b32.xlu0 %v298, 8
        %v1409 = vpop.permute.xlu0 %1408
        %1410 = vrot.lane.b32.xlu0 %v299, 8
        %v1411 = vpop.permute.xlu0 %1410
        %1412 = vrot.lane.b32.xlu0 %v300, 8
        %v1413 = vpop.permute.xlu0 %1412
        %1414 = vrot.lane.b32.xlu0 %v301, 8
        %v1415 = vpop.permute.xlu0 %1414
        %1416 = vrot.lane.b32.xlu0 %v302, 8
        %v1417 = vpop.permute.xlu0 %1416
        %1418 = vrot.lane.b32.xlu0 %v303, 8
        %v1419 = vpop.permute.xlu0 %1418
        %1420 = vrot.lane.b32.xlu0 %v304, 8
        %v1421 = vpop.permute.xlu0 %1420
        %1422 = vrot.lane.b32.xlu0 %v305, 8
        %v1423 = vpop.permute.xlu0 %1422
        %1458 = vrot.lane.b32.xlu0 %v325, 12
        %v1459 = vpop.permute.xlu0 %1458
        %1460 = vrot.lane.b32.xlu0 %v326, 12
        %v1461 = vpop.permute.xlu0 %1460
        %1462 = vrot.lane.b32.xlu0 %v327, 12
        %v1463 = vpop.permute.xlu0 %1462
        %1464 = vrot.lane.b32.xlu0 %v328, 12
        %v1465 = vpop.permute.xlu0 %1464
        %1466 = vrot.lane.b32.xlu0 %v329, 12
        %v1467 = vpop.permute.xlu0 %1466
        %1468 = vrot.lane.b32.xlu0 %v330, 12
        %v1469 = vpop.permute.xlu0 %1468
        %1470 = vrot.lane.b32.xlu0 %v331, 12
        %v1471 = vpop.permute.xlu0 %1470
        %1472 = vrot.lane.b32.xlu0 %v332, 12
        %v1473 = vpop.permute.xlu0 %1472
        %1474 = vrot.lane.b32.xlu0 %v333, 12
        %v1475 = vpop.permute.xlu0 %1474
        %1476 = vrot.lane.b32.xlu0 %v334, 12
        %v1477 = vpop.permute.xlu0 %1476
        %1478 = vrot.lane.b32.xlu0 %v335, 12
        %v1479 = vpop.permute.xlu0 %1478
        %1480 = vrot.lane.b32.xlu0 %v336, 12
        %v1481 = vpop.permute.xlu0 %1480
        %1482 = vrot.lane.b32.xlu0 %v337, 12
        %v1483 = vpop.permute.xlu0 %1482
        %1484 = vrot.lane.b32.xlu0 %v338, 12
        %v1485 = vpop.permute.xlu0 %1484
        %1486 = vrot.lane.b32.xlu0 %v339, 12
        %v1487 = vpop.permute.xlu0 %1486
        %1488 = vrot.lane.b32.xlu0 %v340, 12
        %v1489 = vpop.permute.xlu0 %1488
        %1490 = vrot.lane.b32.xlu0 %v341, 12
        %v1491 = vpop.permute.xlu0 %1490
        %1492 = vrot.lane.b32.xlu0 %v342, 12
        %v1493 = vpop.permute.xlu0 %1492
        %1494 = vrot.lane.b32.xlu0 %v343, 12
        %v1495 = vpop.permute.xlu0 %1494
        %1496 = vrot.lane.b32.xlu0 %v344, 12
        %v1497 = vpop.permute.xlu0 %1496
        %1498 = vrot.lane.b32.xlu0 %v345, 12
        %v1499 = vpop.permute.xlu0 %1498
        %1500 = vrot.lane.b32.xlu0 %v346, 12
        %v1501 = vpop.permute.xlu0 %1500
        %1502 = vrot.lane.b32.xlu0 %v347, 12
        %v1503 = vpop.permute.xlu0 %1502
        %1504 = vrot.lane.b32.xlu0 %v348, 12
        %v1505 = vpop.permute.xlu0 %1504
        %1506 = vrot.lane.b32.xlu0 %v349, 12
        %v1507 = vpop.permute.xlu0 %1506
        %1508 = vrot.lane.b32.xlu0 %v350, 12
        %v1509 = vpop.permute.xlu0 %1508
        %1510 = vrot.lane.b32.xlu0 %v351, 12
        %v1511 = vpop.permute.xlu0 %1510
        %1512 = vrot.lane.b32.xlu0 %v352, 12
        %v1513 = vpop.permute.xlu0 %1512
        %1514 = vrot.lane.b32.xlu0 %v353, 12
        %v1515 = vpop.permute.xlu0 %1514
        %1516 = vrot.lane.b32.xlu0 %v354, 12
        %v1517 = vpop.permute.xlu0 %1516
        %1518 = vrot.lane.b32.xlu0 %v355, 12
        %v1519 = vpop.permute.xlu0 %1518
        %1520 = vrot.lane.b32.xlu0 %v356, 12
        %v1521 = vpop.permute.xlu0 %1520
        %v1554 = vsel %vm720, %v312, %v1265
        %v1555 = vsel %vm720, %v314, %v1267
        %v1556 = vsel %vm720, %v274, %v1269
        %v1557 = vsel %vm720, %v275, %v1271
        %v1558 = vsel %vm720, %v276, %v1273
        %v1559 = vsel %vm720, %v277, %v1275
        %v1560 = vsel %vm720, %v278, %v1277
        %v1561 = vsel %vm720, %v279, %v1279
        %v1562 = vsel %vm720, %v280, %v1281
        %v1563 = vsel %vm720, %v281, %v1283
        %v1564 = vsel %vm720, %v282, %v1285
        %v1565 = vsel %vm720, %v283, %v1287
        %v1566 = vsel %vm720, %v284, %v1289
        %v1567 = vsel %vm720, %v285, %v1291
        %v1568 = vsel %vm720, %v286, %v1293
        %v1569 = vsel %vm720, %v287, %v1295
        %v1570 = vsel %vm720, %v288, %v1297
        %v1571 = vsel %vm720, %v289, %v1299
        %v1572 = vsel %vm720, %v290, %v1301
        %v1573 = vsel %vm720, %v291, %v1303
        %v1574 = vsel %vm720, %v292, %v1305
        %v1575 = vsel %vm720, %v293, %v1307
        %v1576 = vsel %vm720, %v294, %v1309
        %v1577 = vsel %vm720, %v295, %v1311
        %v1578 = vsel %vm720, %v296, %v1313
        %v1579 = vsel %vm720, %v297, %v1315
        %v1580 = vsel %vm720, %v298, %v1317
        %v1581 = vsel %vm720, %v299, %v1319
        %v1582 = vsel %vm720, %v300, %v1321
        %v1583 = vsel %vm720, %v301, %v1323
        %v1584 = vsel %vm720, %v302, %v1325
        %v1585 = vsel %vm720, %v303, %v1327
        %v1586 = vsel %vm753, %v1554, %v1361
        %v1587 = vsel %vm753, %v1555, %v1363
        %v1588 = vsel %vm753, %v1556, %v1365
        %v1589 = vsel %vm753, %v1557, %v1367
        %v1590 = vsel %vm753, %v1558, %v1369
        %v1591 = vsel %vm753, %v1559, %v1371
        %v1592 = vsel %vm753, %v1560, %v1373
        %v1593 = vsel %vm753, %v1561, %v1375
        %v1594 = vsel %vm753, %v1562, %v1377
        %v1595 = vsel %vm753, %v1563, %v1379
        %v1596 = vsel %vm753, %v1564, %v1381
        %v1597 = vsel %vm753, %v1565, %v1383
        %v1598 = vsel %vm753, %v1566, %v1385
        %v1599 = vsel %vm753, %v1567, %v1387
        %v1600 = vsel %vm753, %v1568, %v1389
        %v1601 = vsel %vm753, %v1569, %v1391
        %v1602 = vsel %vm753, %v1570, %v1393
        %v1603 = vsel %vm753, %v1571, %v1395
        %v1604 = vsel %vm753, %v1572, %v1397
        %v1605 = vsel %vm753, %v1573, %v1399
        %v1606 = vsel %vm753, %v1574, %v1401
        %v1607 = vsel %vm753, %v1575, %v1403
        %v1608 = vsel %vm753, %v1576, %v1405
        %v1609 = vsel %vm753, %v1577, %v1407
        %v1610 = vsel %vm753, %v1578, %v1409
        %v1611 = vsel %vm753, %v1579, %v1411
        %v1612 = vsel %vm753, %v1580, %v1413
        %v1613 = vsel %vm753, %v1581, %v1415
        %v1614 = vsel %vm753, %v1582, %v1417
        %v1615 = vsel %vm753, %v1583, %v1419
        %v1616 = vsel %vm753, %v1584, %v1421
        %v1617 = vsel %vm753, %v1585, %v1423
        %v1618 = vsel %vm786, %v1586, %v1459
        %v1619 = vsel %vm786, %v1587, %v1461
        %v1620 = vsel %vm786, %v1588, %v1463
        %v1621 = vsel %vm786, %v1589, %v1465
        %v1622 = vsel %vm786, %v1590, %v1467
        %v1623 = vsel %vm786, %v1591, %v1469
        %v1624 = vsel %vm786, %v1592, %v1471
        %v1625 = vsel %vm786, %v1593, %v1473
        %v1626 = vsel %vm786, %v1594, %v1475
        %v1627 = vsel %vm786, %v1595, %v1477
        %v1628 = vsel %vm786, %v1596, %v1479
        %v1629 = vsel %vm786, %v1597, %v1481
        %v1630 = vsel %vm786, %v1598, %v1483
        %v1631 = vsel %vm786, %v1599, %v1485
        %v1632 = vsel %vm786, %v1600, %v1487
        %v1633 = vsel %vm786, %v1601, %v1489
        %v1634 = vsel %vm786, %v1602, %v1491
        %v1635 = vsel %vm786, %v1603, %v1493
        %v1636 = vsel %vm786, %v1604, %v1495
        %v1637 = vsel %vm786, %v1605, %v1497
        %v1638 = vsel %vm786, %v1606, %v1499
        %v1639 = vsel %vm786, %v1607, %v1501
        %v1640 = vsel %vm786, %v1608, %v1503
        %v1641 = vsel %vm786, %v1609, %v1505
        %v1642 = vsel %vm786, %v1610, %v1507
        %v1643 = vsel %vm786, %v1611, %v1509
        %v1644 = vsel %vm786, %v1612, %v1511
        %v1645 = vsel %vm786, %v1613, %v1513
        %v1646 = vsel %vm786, %v1614, %v1515
        %v1647 = vsel %vm786, %v1615, %v1517
        %v1648 = vsel %vm786, %v1616, %v1519
        %v1649 = vsel %vm786, %v1617, %v1521
        %s1650 = scalar_lea.vmem %s2, 16
        %v1651 = vld [vmem:[%s1650] sm:$0xff]
        %v1652 = vld [vmem:[%s1650 + $0x8] sm:$0xff]
        %v1654 = vsel %vm821, %v1618, 0
        %v1657 = vsel %vm821, %v1619, 0
        %v1660 = vsel %vm821, %v1620, 0
        %v1663 = vsel %vm821, %v1621, 0
        %v1666 = vsel %vm821, %v1622, 0
        %v1669 = vsel %vm821, %v1623, 0
        %v1672 = vsel %vm821, %v1624, 0
        %v1675 = vsel %vm821, %v1625, 0
        %v1678 = vsel %vm821, %v1626, 0
        %v1681 = vsel %vm821, %v1627, 0
        %v1684 = vsel %vm821, %v1628, 0
        %v1687 = vsel %vm821, %v1629, 0
        %v1690 = vsel %vm821, %v1630, 0
        %v1693 = vsel %vm821, %v1631, 0
        %v1696 = vsel %vm821, %v1632, 0
        %v1699 = vsel %vm821, %v1633, 0
        %v1702 = vsel %vm821, %v1634, 0
        %v1705 = vsel %vm821, %v1635, 0
        %v1708 = vsel %vm821, %v1636, 0
        %v1711 = vsel %vm821, %v1637, 0
        %v1714 = vsel %vm821, %v1638, 0
        %v1717 = vsel %vm821, %v1639, 0
        %v1720 = vsel %vm821, %v1640, 0
        %v1723 = vsel %vm821, %v1641, 0
        %v1726 = vsel %vm821, %v1642, 0
        %v1729 = vsel %vm821, %v1643, 0
        %v1732 = vsel %vm821, %v1644, 0
        %v1735 = vsel %vm821, %v1645, 0
        %v1738 = vsel %vm821, %v1646, 0
        %v1741 = vsel %vm821, %v1647, 0
        %v1744 = vsel %vm821, %v1648, 0
        %v1747 = vsel %vm821, %v1649, 0
        %1749 = vmatpush.msra.mxu0 0.0
        %1750 = vmatpush.msra.mxu0 0.0
        %1751 = vmatpush.msra.mxu0 0.0
        %1752 = vmatpush.msra.mxu0 0.0
        %1753 = vmatpush.msra.mxu0 0.0
        %1754 = vmatpush.msra.mxu0 0.0
        %1755 = vmatpush.msra.mxu0 0.0
        %1756 = vmatpush.msra.mxu0 0.0
        %1757 = vmatpush.msra.mxu0 0.0
        %1758 = vmatpush.msra.mxu0 0.0
        %1759 = vmatpush.msra.mxu0 0.0
        %1760 = vmatpush.msra.mxu0 0.0
        %1761 = vmatpush.msra.mxu0 0.0
        %1762 = vmatpush.msra.mxu0 0.0
        %1763 = vmatpush.msra.mxu0 %v1652
        %1764 = vmatpush.msra.mxu0 %v1651
        %1765 = vmatmul.f32.gmra.mxu0 %v1654
        %v1766 = vpop.f32.mrf.mxu0
        %v1767 = vadd.f32 0.0, %v1766
        %1768 = vmatmul.f32.gmra.mxu0 %v1657
        %v1769 = vpop.f32.mrf.mxu0
        %v1770 = vadd.f32 0.0, %v1769
        %1771 = vmatmul.f32.gmra.mxu0 %v1660
        %v1772 = vpop.f32.mrf.mxu0
        %v1773 = vadd.f32 0.0, %v1772
        %1774 = vmatmul.f32.gmra.mxu0 %v1663
        %v1775 = vpop.f32.mrf.mxu0
        %v1776 = vadd.f32 0.0, %v1775
        %1777 = vmatmul.f32.gmra.mxu0 %v1666
        %v1778 = vpop.f32.mrf.mxu0
        %v1779 = vadd.f32 0.0, %v1778
        %1780 = vmatmul.f32.gmra.mxu0 %v1669
        %v1781 = vpop.f32.mrf.mxu0
        %v1782 = vadd.f32 0.0, %v1781
        %1783 = vmatmul.f32.gmra.mxu0 %v1672
        %v1784 = vpop.f32.mrf.mxu0
        %v1785 = vadd.f32 0.0, %v1784
        %1786 = vmatmul.f32.gmra.mxu0 %v1675
        %v1787 = vpop.f32.mrf.mxu0
        %v1788 = vadd.f32 0.0, %v1787
        %1789 = vmatmul.f32.gmra.mxu0 %v1678
        %v1790 = vpop.f32.mrf.mxu0
        %v1791 = vadd.f32 0.0, %v1790
        %1792 = vmatmul.f32.gmra.mxu0 %v1681
        %v1793 = vpop.f32.mrf.mxu0
        %v1794 = vadd.f32 0.0, %v1793
        %1795 = vmatmul.f32.gmra.mxu0 %v1684
        %v1796 = vpop.f32.mrf.mxu0
        %v1797 = vadd.f32 0.0, %v1796
        %1798 = vmatmul.f32.gmra.mxu0 %v1687
        %v1799 = vpop.f32.mrf.mxu0
        %v1800 = vadd.f32 0.0, %v1799
        %1801 = vmatmul.f32.gmra.mxu0 %v1690
        %v1802 = vpop.f32.mrf.mxu0
        %v1803 = vadd.f32 0.0, %v1802
        %1804 = vmatmul.f32.gmra.mxu0 %v1693
        %v1805 = vpop.f32.mrf.mxu0
        %v1806 = vadd.f32 0.0, %v1805
        %1807 = vmatmul.f32.gmra.mxu0 %v1696
        %v1808 = vpop.f32.mrf.mxu0
        %v1809 = vadd.f32 0.0, %v1808
        %1810 = vmatmul.f32.gmra.mxu0 %v1699
        %v1811 = vpop.f32.mrf.mxu0
        %v1812 = vadd.f32 0.0, %v1811
        %1813 = vmatmul.f32.gmra.mxu0 %v1702
        %v1814 = vpop.f32.mrf.mxu0
        %v1815 = vadd.f32 0.0, %v1814
        %1816 = vmatmul.f32.gmra.mxu0 %v1705
        %v1817 = vpop.f32.mrf.mxu0
        %v1818 = vadd.f32 0.0, %v1817
        %1819 = vmatmul.f32.gmra.mxu0 %v1708
        %v1820 = vpop.f32.mrf.mxu0
        %v1821 = vadd.f32 0.0, %v1820
        %1822 = vmatmul.f32.gmra.mxu0 %v1711
        %v1823 = vpop.f32.mrf.mxu0
        %v1824 = vadd.f32 0.0, %v1823
        %1825 = vmatmul.f32.gmra.mxu0 %v1714
        %v1826 = vpop.f32.mrf.mxu0
        %v1827 = vadd.f32 0.0, %v1826
        %1828 = vmatmul.f32.gmra.mxu0 %v1717
        %v1829 = vpop.f32.mrf.mxu0
        %v1830 = vadd.f32 0.0, %v1829
        %1831 = vmatmul.f32.gmra.mxu0 %v1720
        %v1832 = vpop.f32.mrf.mxu0
        %v1833 = vadd.f32 0.0, %v1832
        %1834 = vmatmul.f32.gmra.mxu0 %v1723
        %v1835 = vpop.f32.mrf.mxu0
        %v1836 = vadd.f32 0.0, %v1835
        %1837 = vmatmul.f32.gmra.mxu0 %v1726
        %v1838 = vpop.f32.mrf.mxu0
        %v1839 = vadd.f32 0.0, %v1838
        %1840 = vmatmul.f32.gmra.mxu0 %v1729
        %v1841 = vpop.f32.mrf.mxu0
        %v1842 = vadd.f32 0.0, %v1841
        %1843 = vmatmul.f32.gmra.mxu0 %v1732
        %v1844 = vpop.f32.mrf.mxu0
        %v1845 = vadd.f32 0.0, %v1844
        %1846 = vmatmul.f32.gmra.mxu0 %v1735
        %v1847 = vpop.f32.mrf.mxu0
        %v1848 = vadd.f32 0.0, %v1847
        %1849 = vmatmul.f32.gmra.mxu0 %v1738
        %v1850 = vpop.f32.mrf.mxu0
        %v1851 = vadd.f32 0.0, %v1850
        %1852 = vmatmul.f32.gmra.mxu0 %v1741
        %v1853 = vpop.f32.mrf.mxu0
        %v1854 = vadd.f32 0.0, %v1853
        %1855 = vmatmul.f32.gmra.mxu0 %v1744
        %v1856 = vpop.f32.mrf.mxu0
        %v1857 = vadd.f32 0.0, %v1856
        %1858 = vmatmul.f32.gmra.mxu0 %v1747
        %v1859 = vpop.f32.mrf.mxu0
        %v1860 = vadd.f32 0.0, %v1859
        %1861 = vdwg.mxu0
        %v1862 = vsel %vm753, %v1767, 0.0
        %v1863 = vsel %vm753, %v1770, 0.0
        %v1864 = vadd.f32 %v1862, %v1863
        %v1865 = vsel %vm753, %v1773, 0.0
        %v1866 = vadd.f32 %v1864, %v1865
        %v1867 = vsel %vm753, %v1776, 0.0
        %v1868 = vadd.f32 %v1866, %v1867
        %v1869 = vsel %vm753, %v1779, 0.0
        %v1870 = vadd.f32 %v1868, %v1869
        %v1871 = vsel %vm753, %v1782, 0.0
        %v1872 = vadd.f32 %v1870, %v1871
        %v1873 = vsel %vm753, %v1785, 0.0
        %v1874 = vadd.f32 %v1872, %v1873
        %v1875 = vsel %vm753, %v1788, 0.0
        %v1876 = vadd.f32 %v1874, %v1875
        %v1877 = vsel %vm753, %v1791, 0.0
        %v1878 = vadd.f32 %v1876, %v1877
        %v1879 = vsel %vm753, %v1794, 0.0
        %v1880 = vadd.f32 %v1878, %v1879
        %v1881 = vsel %vm753, %v1797, 0.0
        %v1882 = vadd.f32 %v1880, %v1881
        %v1883 = vsel %vm753, %v1800, 0.0
        %v1884 = vadd.f32 %v1882, %v1883
        %v1885 = vsel %vm753, %v1803, 0.0
        %v1886 = vadd.f32 %v1884, %v1885
        %v1887 = vsel %vm753, %v1806, 0.0
        %v1888 = vadd.f32 %v1886, %v1887
        %v1889 = vsel %vm753, %v1809, 0.0
        %v1890 = vadd.f32 %v1888, %v1889
        %v1891 = vsel %vm753, %v1812, 0.0
        %v1892 = vadd.f32 %v1890, %v1891
        %v1893 = vsel %vm753, %v1815, 0.0
        %v1894 = vadd.f32 %v1892, %v1893
        %v1895 = vsel %vm753, %v1818, 0.0
        %v1896 = vadd.f32 %v1894, %v1895
        %v1897 = vsel %vm753, %v1821, 0.0
        %v1898 = vadd.f32 %v1896, %v1897
        %v1899 = vsel %vm753, %v1824, 0.0
        %v1900 = vadd.f32 %v1898, %v1899
        %v1901 = vsel %vm753, %v1827, 0.0
        %v1902 = vadd.f32 %v1900, %v1901
        %v1903 = vsel %vm753, %v1830, 0.0
        %v1904 = vadd.f32 %v1902, %v1903
        %v1905 = vsel %vm753, %v1833, 0.0
        %v1906 = vadd.f32 %v1904, %v1905
        %v1907 = vsel %vm753, %v1836, 0.0
        %v1908 = vadd.f32 %v1906, %v1907
        %v1909 = vsel %vm753, %v1839, 0.0
        %v1910 = vadd.f32 %v1908, %v1909
        %v1911 = vsel %vm753, %v1842, 0.0
        %v1912 = vadd.f32 %v1910, %v1911
        %v1913 = vsel %vm753, %v1845, 0.0
        %v1914 = vadd.f32 %v1912, %v1913
        %v1915 = vsel %vm753, %v1848, 0.0
        %v1916 = vadd.f32 %v1914, %v1915
        %v1917 = vsel %vm753, %v1851, 0.0
        %v1918 = vadd.f32 %v1916, %v1917
        %v1919 = vsel %vm753, %v1854, 0.0
        %v1920 = vadd.f32 %v1918, %v1919
        %v1921 = vsel %vm753, %v1857, 0.0
        %v1922 = vadd.f32 %v1920, %v1921
        %v1923 = vsel %vm753, %v1860, 0.0
        %v1924 = vadd.f32 %v1922, %v1923
        %v1925 = vrot.slane %v1924, 4
        %v1926 = vadd.f32 %v1924, %v1925
        %v1927 = vrot.slane %v1926, 2
        %v1928 = vadd.f32 %v1926, %v1927
        %v1929 = vrot.slane %v1928, 1
        %v1930 = vadd.f32 %v1928, %v1929
        %v1931 = vmul.f32 %v1930, 0.00390625
        %v1932 = vsub.f32 %v1767, %v1931
        %v1933 = vsub.f32 %v1770, %v1931
        %v1934 = vsub.f32 %v1773, %v1931
        %v1935 = vsub.f32 %v1776, %v1931
        %v1936 = vsub.f32 %v1779, %v1931
        %v1937 = vsub.f32 %v1782, %v1931
        %v1938 = vsub.f32 %v1785, %v1931
        %v1939 = vsub.f32 %v1788, %v1931
        %v1940 = vsub.f32 %v1791, %v1931
        %v1941 = vsub.f32 %v1794, %v1931
        %v1942 = vsub.f32 %v1797, %v1931
        %v1943 = vsub.f32 %v1800, %v1931
        %v1944 = vsub.f32 %v1803, %v1931
        %v1945 = vsub.f32 %v1806, %v1931
        %v1946 = vsub.f32 %v1809, %v1931
        %v1947 = vsub.f32 %v1812, %v1931
        %v1948 = vsub.f32 %v1815, %v1931
        %v1949 = vsub.f32 %v1818, %v1931
        %v1950 = vsub.f32 %v1821, %v1931
        %v1951 = vsub.f32 %v1824, %v1931
        %v1952 = vsub.f32 %v1827, %v1931
        %v1953 = vsub.f32 %v1830, %v1931
        %v1954 = vsub.f32 %v1833, %v1931
        %v1955 = vsub.f32 %v1836, %v1931
        %v1956 = vsub.f32 %v1839, %v1931
        %v1957 = vsub.f32 %v1842, %v1931
        %v1958 = vsub.f32 %v1845, %v1931
        %v1959 = vsub.f32 %v1848, %v1931
        %v1960 = vsub.f32 %v1851, %v1931
        %v1961 = vsub.f32 %v1854, %v1931
        %v1962 = vsub.f32 %v1857, %v1931
        %v1963 = vsub.f32 %v1860, %v1931
        %v1964 = vmul.f32 %v1932, %v1932
        %v1965 = vmul.f32 %v1933, %v1933
        %v1966 = vmul.f32 %v1934, %v1934
        %v1967 = vmul.f32 %v1935, %v1935
        %v1968 = vmul.f32 %v1936, %v1936
        %v1969 = vmul.f32 %v1937, %v1937
        %v1970 = vmul.f32 %v1938, %v1938
        %v1971 = vmul.f32 %v1939, %v1939
        %v1972 = vmul.f32 %v1940, %v1940
        %v1973 = vmul.f32 %v1941, %v1941
        %v1974 = vmul.f32 %v1942, %v1942
        %v1975 = vmul.f32 %v1943, %v1943
        %v1976 = vmul.f32 %v1944, %v1944
        %v1977 = vmul.f32 %v1945, %v1945
        %v1978 = vmul.f32 %v1946, %v1946
        %v1979 = vmul.f32 %v1947, %v1947
        %v1980 = vmul.f32 %v1948, %v1948
        %v1981 = vmul.f32 %v1949, %v1949
        %v1982 = vmul.f32 %v1950, %v1950
        %v1983 = vmul.f32 %v1951, %v1951
        %v1984 = vmul.f32 %v1952, %v1952
        %v1985 = vmul.f32 %v1953, %v1953
        %v1986 = vmul.f32 %v1954, %v1954
        %v1987 = vmul.f32 %v1955, %v1955
        %v1988 = vmul.f32 %v1956, %v1956
        %v1989 = vmul.f32 %v1957, %v1957
        %v1990 = vmul.f32 %v1958, %v1958
        %v1991 = vmul.f32 %v1959, %v1959
        %v1992 = vmul.f32 %v1960, %v1960
        %v1993 = vmul.f32 %v1961, %v1961
        %v1994 = vmul.f32 %v1962, %v1962
        %v1995 = vmul.f32 %v1963, %v1963
        %v1996 = vsel %vm753, %v1964, 0.0
        %v1997 = vsel %vm753, %v1965, 0.0
        %v1998 = vadd.f32 %v1996, %v1997
        %v1999 = vsel %vm753, %v1966, 0.0
        %v2000 = vadd.f32 %v1998, %v1999
        %v2001 = vsel %vm753, %v1967, 0.0
        %v2002 = vadd.f32 %v2000, %v2001
        %v2003 = vsel %vm753, %v1968, 0.0
        %v2004 = vadd.f32 %v2002, %v2003
        %v2005 = vsel %vm753, %v1969, 0.0
        %v2006 = vadd.f32 %v2004, %v2005
        %v2007 = vsel %vm753, %v1970, 0.0
        %v2008 = vadd.f32 %v2006, %v2007
        %v2009 = vsel %vm753, %v1971, 0.0
        %v2010 = vadd.f32 %v2008, %v2009
        %v2011 = vsel %vm753, %v1972, 0.0
        %v2012 = vadd.f32 %v2010, %v2011
        %v2013 = vsel %vm753, %v1973, 0.0
        %v2014 = vadd.f32 %v2012, %v2013
        %v2015 = vsel %vm753, %v1974, 0.0
        %v2016 = vadd.f32 %v2014, %v2015
        %v2017 = vsel %vm753, %v1975, 0.0
        %v2018 = vadd.f32 %v2016, %v2017
        %v2019 = vsel %vm753, %v1976, 0.0
        %v2020 = vadd.f32 %v2018, %v2019
        %v2021 = vsel %vm753, %v1977, 0.0
        %v2022 = vadd.f32 %v2020, %v2021
        %v2023 = vsel %vm753, %v1978, 0.0
        %v2024 = vadd.f32 %v2022, %v2023
        %v2025 = vsel %vm753, %v1979, 0.0
        %v2026 = vadd.f32 %v2024, %v2025
        %v2027 = vsel %vm753, %v1980, 0.0
        %v2028 = vadd.f32 %v2026, %v2027
        %v2029 = vsel %vm753, %v1981, 0.0
        %v2030 = vadd.f32 %v2028, %v2029
        %v2031 = vsel %vm753, %v1982, 0.0
        %v2032 = vadd.f32 %v2030, %v2031
        %v2033 = vsel %vm753, %v1983, 0.0
        %v2034 = vadd.f32 %v2032, %v2033
        %v2035 = vsel %vm753, %v1984, 0.0
        %v2036 = vadd.f32 %v2034, %v2035
        %v2037 = vsel %vm753, %v1985, 0.0
        %v2038 = vadd.f32 %v2036, %v2037
        %v2039 = vsel %vm753, %v1986, 0.0
        %v2040 = vadd.f32 %v2038, %v2039
        %v2041 = vsel %vm753, %v1987, 0.0
        %v2042 = vadd.f32 %v2040, %v2041
        %v2043 = vsel %vm753, %v1988, 0.0
        %v2044 = vadd.f32 %v2042, %v2043
        %v2045 = vsel %vm753, %v1989, 0.0
        %v2046 = vadd.f32 %v2044, %v2045
        %v2047 = vsel %vm753, %v1990, 0.0
        %v2048 = vadd.f32 %v2046, %v2047
        %v2049 = vsel %vm753, %v1991, 0.0
        %v2050 = vadd.f32 %v2048, %v2049
        %v2051 = vsel %vm753, %v1992, 0.0
        %v2052 = vadd.f32 %v2050, %v2051
        %v2053 = vsel %vm753, %v1993, 0.0
        %v2054 = vadd.f32 %v2052, %v2053
        %v2055 = vsel %vm753, %v1994, 0.0
        %v2056 = vadd.f32 %v2054, %v2055
        %v2057 = vsel %vm753, %v1995, 0.0
        %v2058 = vadd.f32 %v2056, %v2057
        %v2059 = vrot.slane %v2058, 4
        %v2060 = vadd.f32 %v2058, %v2059
        %v2061 = vrot.slane %v2060, 2
        %v2062 = vadd.f32 %v2060, %v2061
        %v2063 = vrot.slane %v2062, 1
        %v2064 = vadd.f32 %v2062, %v2063
        %v2065 = vsub.f32 %v1931, %v1100
        %v2066 = vadd.f32 %v1233, %v2064
        %v2067 = vmul.f32 %v2065, %v2065
        %v2068 = vmul.f32 %v2067, 128.0
        %v2069 = vadd.f32 %v2066, %v2068
        %v2070 = vadd.f32 %v1099, %v1930
        %2071 = vrot.lane.b32.xlu0 %v304, 4
        %v2072 = vpop.permute.xlu0 %2071
        %2073 = vrot.lane.b32.xlu0 %v305, 4
        %v2074 = vpop.permute.xlu0 %2073
        %2077 = vrot.lane.b32.xlu0 %v239, 8
        %v2078 = vpop.permute.xlu0 %2077
        %2079 = vrot.lane.b32.xlu0 %v240, 8
        %v2080 = vpop.permute.xlu0 %2079
        %2083 = vrot.lane.b32.xlu0 %v322, 12
        %v2084 = vpop.permute.xlu0 %2083
        %2085 = vrot.lane.b32.xlu0 %v324, 12
        %v2086 = vpop.permute.xlu0 %2085
        %v2089 = vsel %vm720, %v272, %v2072
        %v2090 = vsel %vm720, %v273, %v2074
        %v2091 = vsel %vm753, %v2089, %v2078
        %v2092 = vsel %vm753, %v2090, %v2080
        %v2093 = vsel %vm786, %v2091, %v2084
        %v2094 = vsel %vm786, %v2092, %v2086
        %s2095 = scalar_lea.vmem %s2, 32
        %v2096 = vld [vmem:[%s2095] sm:$0xff]
        %v2097 = vld [vmem:[%s2095 + $0x8] sm:$0xff]
        %v2099 = vsel %vm821, %v2093, 0
        %v2102 = vsel %vm821, %v2094, 0
        %2104 = vmatpush.msra.mxu0 0.0
        %2105 = vmatpush.msra.mxu0 0.0
        %2106 = vmatpush.msra.mxu0 0.0
        %2107 = vmatpush.msra.mxu0 0.0
        %2108 = vmatpush.msra.mxu0 0.0
        %2109 = vmatpush.msra.mxu0 0.0
        %2110 = vmatpush.msra.mxu0 0.0
        %2111 = vmatpush.msra.mxu0 0.0
        %2112 = vmatpush.msra.mxu0 0.0
        %2113 = vmatpush.msra.mxu0 0.0
        %2114 = vmatpush.msra.mxu0 0.0
        %2115 = vmatpush.msra.mxu0 0.0
        %2116 = vmatpush.msra.mxu0 0.0
        %2117 = vmatpush.msra.mxu0 0.0
        %2118 = vmatpush.msra.mxu0 %v2097
        %2119 = vmatpush.msra.mxu0 %v2096
        %2120 = vmatmul.f32.gmra.mxu0 %v829
        %v2121 = vpop.f32.mrf.mxu0
        %v2122 = vadd.f32 0.0, %v2121
        %2123 = vmatmul.f32.gmra.mxu0 %v832
        %v2124 = vpop.f32.mrf.mxu0
        %v2125 = vadd.f32 0.0, %v2124
        %2126 = vmatmul.f32.gmra.mxu0 %v835
        %v2127 = vpop.f32.mrf.mxu0
        %v2128 = vadd.f32 0.0, %v2127
        %2129 = vmatmul.f32.gmra.mxu0 %v838
        %v2130 = vpop.f32.mrf.mxu0
        %v2131 = vadd.f32 0.0, %v2130
        %2132 = vmatmul.f32.gmra.mxu0 %v841
        %v2133 = vpop.f32.mrf.mxu0
        %v2134 = vadd.f32 0.0, %v2133
        %2135 = vmatmul.f32.gmra.mxu0 %v844
        %v2136 = vpop.f32.mrf.mxu0
        %v2137 = vadd.f32 0.0, %v2136
        %2138 = vmatmul.f32.gmra.mxu0 %v847
        %v2139 = vpop.f32.mrf.mxu0
        %v2140 = vadd.f32 0.0, %v2139
        %2141 = vmatmul.f32.gmra.mxu0 %v850
        %v2142 = vpop.f32.mrf.mxu0
        %v2143 = vadd.f32 0.0, %v2142
        %2144 = vmatmul.f32.gmra.mxu0 %v853
        %v2145 = vpop.f32.mrf.mxu0
        %v2146 = vadd.f32 0.0, %v2145
        %2147 = vmatmul.f32.gmra.mxu0 %v856
        %v2148 = vpop.f32.mrf.mxu0
        %v2149 = vadd.f32 0.0, %v2148
        %2150 = vmatmul.f32.gmra.mxu0 %v859
        %v2151 = vpop.f32.mrf.mxu0
        %v2152 = vadd.f32 0.0, %v2151
        %2153 = vmatmul.f32.gmra.mxu0 %v862
        %v2154 = vpop.f32.mrf.mxu0
        %v2155 = vadd.f32 0.0, %v2154
        %2156 = vmatmul.f32.gmra.mxu0 %v865
        %v2157 = vpop.f32.mrf.mxu0
        %v2158 = vadd.f32 0.0, %v2157
        %2159 = vmatmul.f32.gmra.mxu0 %v868
        %v2160 = vpop.f32.mrf.mxu0
        %v2161 = vadd.f32 0.0, %v2160
        %2162 = vmatmul.f32.gmra.mxu0 %v871
        %v2163 = vpop.f32.mrf.mxu0
        %v2164 = vadd.f32 0.0, %v2163
        %2165 = vmatmul.f32.gmra.mxu0 %v874
        %v2166 = vpop.f32.mrf.mxu0
        %v2167 = vadd.f32 0.0, %v2166
        %2168 = vmatmul.f32.gmra.mxu0 %v877
        %v2169 = vpop.f32.mrf.mxu0
        %v2170 = vadd.f32 0.0, %v2169
        %2171 = vmatmul.f32.gmra.mxu0 %v880
        %v2172 = vpop.f32.mrf.mxu0
        %v2173 = vadd.f32 0.0, %v2172
        %2174 = vmatmul.f32.gmra.mxu0 %v883
        %v2175 = vpop.f32.mrf.mxu0
        %v2176 = vadd.f32 0.0, %v2175
        %2177 = vmatmul.f32.gmra.mxu0 %v886
        %v2178 = vpop.f32.mrf.mxu0
        %v2179 = vadd.f32 0.0, %v2178
        %2180 = vmatmul.f32.gmra.mxu0 %v889
        %v2181 = vpop.f32.mrf.mxu0
        %v2182 = vadd.f32 0.0, %v2181
        %2183 = vmatmul.f32.gmra.mxu0 %v892
        %v2184 = vpop.f32.mrf.mxu0
        %v2185 = vadd.f32 0.0, %v2184
        %2186 = vmatmul.f32.gmra.mxu0 %v895
        %v2187 = vpop.f32.mrf.mxu0
        %v2188 = vadd.f32 0.0, %v2187
        %2189 = vmatmul.f32.gmra.mxu0 %v898
        %v2190 = vpop.f32.mrf.mxu0
        %v2191 = vadd.f32 0.0, %v2190
        %2192 = vmatmul.f32.gmra.mxu0 %v901
        %v2193 = vpop.f32.mrf.mxu0
        %v2194 = vadd.f32 0.0, %v2193
        %2195 = vmatmul.f32.gmra.mxu0 %v904
        %v2196 = vpop.f32.mrf.mxu0
        %v2197 = vadd.f32 0.0, %v2196
        %2198 = vmatmul.f32.gmra.mxu0 %v907
        %v2199 = vpop.f32.mrf.mxu0
        %v2200 = vadd.f32 0.0, %v2199
        %2201 = vmatmul.f32.gmra.mxu0 %v910
        %v2202 = vpop.f32.mrf.mxu0
        %v2203 = vadd.f32 0.0, %v2202
        %2204 = vmatmul.f32.gmra.mxu0 %v913
        %v2205 = vpop.f32.mrf.mxu0
        %v2206 = vadd.f32 0.0, %v2205
        %2207 = vmatmul.f32.gmra.mxu0 %v916
        %v2208 = vpop.f32.mrf.mxu0
        %v2209 = vadd.f32 0.0, %v2208
        %2210 = vmatmul.f32.gmra.mxu0 %v2099
        %v2211 = vpop.f32.mrf.mxu0
        %v2212 = vadd.f32 0.0, %v2211
        %2213 = vmatmul.f32.gmra.mxu0 %v2102
        %v2214 = vpop.f32.mrf.mxu0
        %v2215 = vadd.f32 0.0, %v2214
        %2216 = vdwg.mxu0
        %v2217 = vsel %vm753, %v2122, 0.0
        %v2218 = vsel %vm753, %v2125, 0.0
        %v2219 = vadd.f32 %v2217, %v2218
        %v2220 = vsel %vm753, %v2128, 0.0
        %v2221 = vadd.f32 %v2219, %v2220
        %v2222 = vsel %vm753, %v2131, 0.0
        %v2223 = vadd.f32 %v2221, %v2222
        %v2224 = vsel %vm753, %v2134, 0.0
        %v2225 = vadd.f32 %v2223, %v2224
        %v2226 = vsel %vm753, %v2137, 0.0
        %v2227 = vadd.f32 %v2225, %v2226
        %v2228 = vsel %vm753, %v2140, 0.0
        %v2229 = vadd.f32 %v2227, %v2228
        %v2230 = vsel %vm753, %v2143, 0.0
        %v2231 = vadd.f32 %v2229, %v2230
        %v2232 = vsel %vm753, %v2146, 0.0
        %v2233 = vadd.f32 %v2231, %v2232
        %v2234 = vsel %vm753, %v2149, 0.0
        %v2235 = vadd.f32 %v2233, %v2234
        %v2236 = vsel %vm753, %v2152, 0.0
        %v2237 = vadd.f32 %v2235, %v2236
        %v2238 = vsel %vm753, %v2155, 0.0
        %v2239 = vadd.f32 %v2237, %v2238
        %v2240 = vsel %vm753, %v2158, 0.0
        %v2241 = vadd.f32 %v2239, %v2240
        %v2242 = vsel %vm753, %v2161, 0.0
        %v2243 = vadd.f32 %v2241, %v2242
        %v2244 = vsel %vm753, %v2164, 0.0
        %v2245 = vadd.f32 %v2243, %v2244
        %v2246 = vsel %vm753, %v2167, 0.0
        %v2247 = vadd.f32 %v2245, %v2246
        %v2248 = vsel %vm753, %v2170, 0.0
        %v2249 = vadd.f32 %v2247, %v2248
        %v2250 = vsel %vm753, %v2173, 0.0
        %v2251 = vadd.f32 %v2249, %v2250
        %v2252 = vsel %vm753, %v2176, 0.0
        %v2253 = vadd.f32 %v2251, %v2252
        %v2254 = vsel %vm753, %v2179, 0.0
        %v2255 = vadd.f32 %v2253, %v2254
        %v2256 = vsel %vm753, %v2182, 0.0
        %v2257 = vadd.f32 %v2255, %v2256
        %v2258 = vsel %vm753, %v2185, 0.0
        %v2259 = vadd.f32 %v2257, %v2258
        %v2260 = vsel %vm753, %v2188, 0.0
        %v2261 = vadd.f32 %v2259, %v2260
        %v2262 = vsel %vm753, %v2191, 0.0
        %v2263 = vadd.f32 %v2261, %v2262
        %v2264 = vsel %vm753, %v2194, 0.0
        %v2265 = vadd.f32 %v2263, %v2264
        %v2266 = vsel %vm753, %v2197, 0.0
        %v2267 = vadd.f32 %v2265, %v2266
        %v2268 = vsel %vm753, %v2200, 0.0
        %v2269 = vadd.f32 %v2267, %v2268
        %v2270 = vsel %vm753, %v2203, 0.0
        %v2271 = vadd.f32 %v2269, %v2270
        %v2272 = vsel %vm753, %v2206, 0.0
        %v2273 = vadd.f32 %v2271, %v2272
        %v2274 = vsel %vm753, %v2209, 0.0
        %v2275 = vadd.f32 %v2273, %v2274
        %v2276 = vsel %vm753, %v2212, 0.0
        %v2277 = vadd.f32 %v2275, %v2276
        %v2278 = vsel %vm753, %v2215, 0.0
        %v2279 = vadd.f32 %v2277, %v2278
        %v2280 = vrot.slane %v2279, 4
        %v2281 = vadd.f32 %v2279, %v2280
        %v2282 = vrot.slane %v2281, 2
        %v2283 = vadd.f32 %v2281, %v2282
        %v2284 = vrot.slane %v2283, 1
        %v2285 = vadd.f32 %v2283, %v2284
        %v2286 = vmul.f32 %v2285, 0.00390625
        %v2287 = vsub.f32 %v2122, %v2286
        %v2288 = vsub.f32 %v2125, %v2286
        %v2289 = vsub.f32 %v2128, %v2286
        %v2290 = vsub.f32 %v2131, %v2286
        %v2291 = vsub.f32 %v2134, %v2286
        %v2292 = vsub.f32 %v2137, %v2286
        %v2293 = vsub.f32 %v2140, %v2286
        %v2294 = vsub.f32 %v2143, %v2286
        %v2295 = vsub.f32 %v2146, %v2286
        %v2296 = vsub.f32 %v2149, %v2286
        %v2297 = vsub.f32 %v2152, %v2286
        %v2298 = vsub.f32 %v2155, %v2286
        %v2299 = vsub.f32 %v2158, %v2286
        %v2300 = vsub.f32 %v2161, %v2286
        %v2301 = vsub.f32 %v2164, %v2286
        %v2302 = vsub.f32 %v2167, %v2286
        %v2303 = vsub.f32 %v2170, %v2286
        %v2304 = vsub.f32 %v2173, %v2286
        %v2305 = vsub.f32 %v2176, %v2286
        %v2306 = vsub.f32 %v2179, %v2286
        %v2307 = vsub.f32 %v2182, %v2286
        %v2308 = vsub.f32 %v2185, %v2286
        %v2309 = vsub.f32 %v2188, %v2286
        %v2310 = vsub.f32 %v2191, %v2286
        %v2311 = vsub.f32 %v2194, %v2286
        %v2312 = vsub.f32 %v2197, %v2286
        %v2313 = vsub.f32 %v2200, %v2286
        %v2314 = vsub.f32 %v2203, %v2286
        %v2315 = vsub.f32 %v2206, %v2286
        %v2316 = vsub.f32 %v2209, %v2286
        %v2317 = vsub.f32 %v2212, %v2286
        %v2318 = vsub.f32 %v2215, %v2286
        %v2319 = vmul.f32 %v2287, %v2287
        %v2320 = vmul.f32 %v2288, %v2288
        %v2321 = vmul.f32 %v2289, %v2289
        %v2322 = vmul.f32 %v2290, %v2290
        %v2323 = vmul.f32 %v2291, %v2291
        %v2324 = vmul.f32 %v2292, %v2292
        %v2325 = vmul.f32 %v2293, %v2293
        %v2326 = vmul.f32 %v2294, %v2294
        %v2327 = vmul.f32 %v2295, %v2295
        %v2328 = vmul.f32 %v2296, %v2296
        %v2329 = vmul.f32 %v2297, %v2297
        %v2330 = vmul.f32 %v2298, %v2298
        %v2331 = vmul.f32 %v2299, %v2299
        %v2332 = vmul.f32 %v2300, %v2300
        %v2333 = vmul.f32 %v2301, %v2301
        %v2334 = vmul.f32 %v2302, %v2302
        %v2335 = vmul.f32 %v2303, %v2303
        %v2336 = vmul.f32 %v2304, %v2304
        %v2337 = vmul.f32 %v2305, %v2305
        %v2338 = vmul.f32 %v2306, %v2306
        %v2339 = vmul.f32 %v2307, %v2307
        %v2340 = vmul.f32 %v2308, %v2308
        %v2341 = vmul.f32 %v2309, %v2309
        %v2342 = vmul.f32 %v2310, %v2310
        %v2343 = vmul.f32 %v2311, %v2311
        %v2344 = vmul.f32 %v2312, %v2312
        %v2345 = vmul.f32 %v2313, %v2313
        %v2346 = vmul.f32 %v2314, %v2314
        %v2347 = vmul.f32 %v2315, %v2315
        %v2348 = vmul.f32 %v2316, %v2316
        %v2349 = vmul.f32 %v2317, %v2317
        %v2350 = vmul.f32 %v2318, %v2318
        %v2351 = vsel %vm753, %v2319, 0.0
        %v2352 = vsel %vm753, %v2320, 0.0
        %v2353 = vadd.f32 %v2351, %v2352
        %v2354 = vsel %vm753, %v2321, 0.0
        %v2355 = vadd.f32 %v2353, %v2354
        %v2356 = vsel %vm753, %v2322, 0.0
        %v2357 = vadd.f32 %v2355, %v2356
        %v2358 = vsel %vm753, %v2323, 0.0
        %v2359 = vadd.f32 %v2357, %v2358
        %v2360 = vsel %vm753, %v2324, 0.0
        %v2361 = vadd.f32 %v2359, %v2360
        %v2362 = vsel %vm753, %v2325, 0.0
        %v2363 = vadd.f32 %v2361, %v2362
        %v2364 = vsel %vm753, %v2326, 0.0
        %v2365 = vadd.f32 %v2363, %v2364
        %v2366 = vsel %vm753, %v2327, 0.0
        %v2367 = vadd.f32 %v2365, %v2366
        %v2368 = vsel %vm753, %v2328, 0.0
        %v2369 = vadd.f32 %v2367, %v2368
        %v2370 = vsel %vm753, %v2329, 0.0
        %v2371 = vadd.f32 %v2369, %v2370
        %v2372 = vsel %vm753, %v2330, 0.0
        %v2373 = vadd.f32 %v2371, %v2372
        %v2374 = vsel %vm753, %v2331, 0.0
        %v2375 = vadd.f32 %v2373, %v2374
        %v2376 = vsel %vm753, %v2332, 0.0
        %v2377 = vadd.f32 %v2375, %v2376
        %v2378 = vsel %vm753, %v2333, 0.0
        %v2379 = vadd.f32 %v2377, %v2378
        %v2380 = vsel %vm753, %v2334, 0.0
        %v2381 = vadd.f32 %v2379, %v2380
        %v2382 = vsel %vm753, %v2335, 0.0
        %v2383 = vadd.f32 %v2381, %v2382
        %v2384 = vsel %vm753, %v2336, 0.0
        %v2385 = vadd.f32 %v2383, %v2384
        %v2386 = vsel %vm753, %v2337, 0.0
        %v2387 = vadd.f32 %v2385, %v2386
        %v2388 = vsel %vm753, %v2338, 0.0
        %v2389 = vadd.f32 %v2387, %v2388
        %v2390 = vsel %vm753, %v2339, 0.0
        %v2391 = vadd.f32 %v2389, %v2390
        %v2392 = vsel %vm753, %v2340, 0.0
        %v2393 = vadd.f32 %v2391, %v2392
        %v2394 = vsel %vm753, %v2341, 0.0
        %v2395 = vadd.f32 %v2393, %v2394
        %v2396 = vsel %vm753, %v2342, 0.0
        %v2397 = vadd.f32 %v2395, %v2396
        %v2398 = vsel %vm753, %v2343, 0.0
        %v2399 = vadd.f32 %v2397, %v2398
        %v2400 = vsel %vm753, %v2344, 0.0
        %v2401 = vadd.f32 %v2399, %v2400
        %v2402 = vsel %vm753, %v2345, 0.0
        %v2403 = vadd.f32 %v2401, %v2402
        %v2404 = vsel %vm753, %v2346, 0.0
        %v2405 = vadd.f32 %v2403, %v2404
        %v2406 = vsel %vm753, %v2347, 0.0
        %v2407 = vadd.f32 %v2405, %v2406
        %v2408 = vsel %vm753, %v2348, 0.0
        %v2409 = vadd.f32 %v2407, %v2408
        %v2410 = vsel %vm753, %v2349, 0.0
        %v2411 = vadd.f32 %v2409, %v2410
        %v2412 = vsel %vm753, %v2350, 0.0
        %v2413 = vadd.f32 %v2411, %v2412
        %v2414 = vrot.slane %v2413, 4
        %v2415 = vadd.f32 %v2413, %v2414
        %v2416 = vrot.slane %v2415, 2
        %v2417 = vadd.f32 %v2415, %v2416
        %v2418 = vrot.slane %v2417, 1
        %v2419 = vadd.f32 %v2417, %v2418
        %v2420 = vmul.f32 %v2070, 0.001953125
        %v2421 = vsub.f32 %v2286, %v2420
        %v2422 = vadd.f32 %v2069, %v2419
        %v2423 = vmul.f32 %v2421, %v2421
        %v2424 = vmul.f32 %v2423, 170.66667
        %v2425 = vadd.f32 %v2422, %v2424
        %v2426 = vadd.f32 %v2070, %v2285
        %2427 = vrot.lane.b32.xlu0 %v355, 4
        %v2428 = vpop.permute.xlu0 %2427
        %2429 = vrot.lane.b32.xlu0 %v356, 4
        %v2430 = vpop.permute.xlu0 %2429
        %2433 = vrot.lane.b32.xlu0 %v322, 8
        %v2434 = vpop.permute.xlu0 %2433
        %2435 = vrot.lane.b32.xlu0 %v324, 8
        %v2436 = vpop.permute.xlu0 %2435
        %2439 = vrot.lane.b32.xlu0 %v365, 12
        %v2440 = vpop.permute.xlu0 %2439
        %2441 = vrot.lane.b32.xlu0 %v367, 12
        %v2442 = vpop.permute.xlu0 %2441
        %v2445 = vsel %vm720, %v304, %v2428
        %v2446 = vsel %vm720, %v305, %v2430
        %v2447 = vsel %vm753, %v2445, %v2434
        %v2448 = vsel %vm753, %v2446, %v2436
        %v2449 = vsel %vm786, %v2447, %v2440
        %v2450 = vsel %vm786, %v2448, %v2442
        %s2451 = scalar_lea.vmem %s2, 48
        %v2452 = vld [vmem:[%s2451] sm:$0xff]
        %v2453 = vld [vmem:[%s2451 + $0x8] sm:$0xff]
        %v2455 = vsel %vm821, %v2449, 0
        %v2458 = vsel %vm821, %v2450, 0
        %2460 = vmatpush.msra.mxu0 0.0
        %2461 = vmatpush.msra.mxu0 0.0
        %2462 = vmatpush.msra.mxu0 0.0
        %2463 = vmatpush.msra.mxu0 0.0
        %2464 = vmatpush.msra.mxu0 0.0
        %2465 = vmatpush.msra.mxu0 0.0
        %2466 = vmatpush.msra.mxu0 0.0
        %2467 = vmatpush.msra.mxu0 0.0
        %2468 = vmatpush.msra.mxu0 0.0
        %2469 = vmatpush.msra.mxu0 0.0
        %2470 = vmatpush.msra.mxu0 0.0
        %2471 = vmatpush.msra.mxu0 0.0
        %2472 = vmatpush.msra.mxu0 0.0
        %2473 = vmatpush.msra.mxu0 0.0
        %2474 = vmatpush.msra.mxu0 %v2453
        %2475 = vmatpush.msra.mxu0 %v2452
        %2476 = vmatmul.f32.gmra.mxu0 %v1660
        %v2477 = vpop.f32.mrf.mxu0
        %v2478 = vadd.f32 0.0, %v2477
        %2479 = vmatmul.f32.gmra.mxu0 %v1663
        %v2480 = vpop.f32.mrf.mxu0
        %v2481 = vadd.f32 0.0, %v2480
        %2482 = vmatmul.f32.gmra.mxu0 %v1666
        %v2483 = vpop.f32.mrf.mxu0
        %v2484 = vadd.f32 0.0, %v2483
        %2485 = vmatmul.f32.gmra.mxu0 %v1669
        %v2486 = vpop.f32.mrf.mxu0
        %v2487 = vadd.f32 0.0, %v2486
        %2488 = vmatmul.f32.gmra.mxu0 %v1672
        %v2489 = vpop.f32.mrf.mxu0
        %v2490 = vadd.f32 0.0, %v2489
        %2491 = vmatmul.f32.gmra.mxu0 %v1675
        %v2492 = vpop.f32.mrf.mxu0
        %v2493 = vadd.f32 0.0, %v2492
        %2494 = vmatmul.f32.gmra.mxu0 %v1678
        %v2495 = vpop.f32.mrf.mxu0
        %v2496 = vadd.f32 0.0, %v2495
        %2497 = vmatmul.f32.gmra.mxu0 %v1681
        %v2498 = vpop.f32.mrf.mxu0
        %v2499 = vadd.f32 0.0, %v2498
        %2500 = vmatmul.f32.gmra.mxu0 %v1684
        %v2501 = vpop.f32.mrf.mxu0
        %v2502 = vadd.f32 0.0, %v2501
        %2503 = vmatmul.f32.gmra.mxu0 %v1687
        %v2504 = vpop.f32.mrf.mxu0
        %v2505 = vadd.f32 0.0, %v2504
        %2506 = vmatmul.f32.gmra.mxu0 %v1690
        %v2507 = vpop.f32.mrf.mxu0
        %v2508 = vadd.f32 0.0, %v2507
        %2509 = vmatmul.f32.gmra.mxu0 %v1693
        %v2510 = vpop.f32.mrf.mxu0
        %v2511 = vadd.f32 0.0, %v2510
        %2512 = vmatmul.f32.gmra.mxu0 %v1696
        %v2513 = vpop.f32.mrf.mxu0
        %v2514 = vadd.f32 0.0, %v2513
        %2515 = vmatmul.f32.gmra.mxu0 %v1699
        %v2516 = vpop.f32.mrf.mxu0
        %v2517 = vadd.f32 0.0, %v2516
        %2518 = vmatmul.f32.gmra.mxu0 %v1702
        %v2519 = vpop.f32.mrf.mxu0
        %v2520 = vadd.f32 0.0, %v2519
        %2521 = vmatmul.f32.gmra.mxu0 %v1705
        %v2522 = vpop.f32.mrf.mxu0
        %v2523 = vadd.f32 0.0, %v2522
        %2524 = vmatmul.f32.gmra.mxu0 %v1708
        %v2525 = vpop.f32.mrf.mxu0
        %v2526 = vadd.f32 0.0, %v2525
        %2527 = vmatmul.f32.gmra.mxu0 %v1711
        %v2528 = vpop.f32.mrf.mxu0
        %v2529 = vadd.f32 0.0, %v2528
        %2530 = vmatmul.f32.gmra.mxu0 %v1714
        %v2531 = vpop.f32.mrf.mxu0
        %v2532 = vadd.f32 0.0, %v2531
        %2533 = vmatmul.f32.gmra.mxu0 %v1717
        %v2534 = vpop.f32.mrf.mxu0
        %v2535 = vadd.f32 0.0, %v2534
        %2536 = vmatmul.f32.gmra.mxu0 %v1720
        %v2537 = vpop.f32.mrf.mxu0
        %v2538 = vadd.f32 0.0, %v2537
        %2539 = vmatmul.f32.gmra.mxu0 %v1723
        %v2540 = vpop.f32.mrf.mxu0
        %v2541 = vadd.f32 0.0, %v2540
        %2542 = vmatmul.f32.gmra.mxu0 %v1726
        %v2543 = vpop.f32.mrf.mxu0
        %v2544 = vadd.f32 0.0, %v2543
        %2545 = vmatmul.f32.gmra.mxu0 %v1729
        %v2546 = vpop.f32.mrf.mxu0
        %v2547 = vadd.f32 0.0, %v2546
        %2548 = vmatmul.f32.gmra.mxu0 %v1732
        %v2549 = vpop.f32.mrf.mxu0
        %v2550 = vadd.f32 0.0, %v2549
        %2551 = vmatmul.f32.gmra.mxu0 %v1735
        %v2552 = vpop.f32.mrf.mxu0
        %v2553 = vadd.f32 0.0, %v2552
        %2554 = vmatmul.f32.gmra.mxu0 %v1738
        %v2555 = vpop.f32.mrf.mxu0
        %v2556 = vadd.f32 0.0, %v2555
        %2557 = vmatmul.f32.gmra.mxu0 %v1741
        %v2558 = vpop.f32.mrf.mxu0
        %v2559 = vadd.f32 0.0, %v2558
        %2560 = vmatmul.f32.gmra.mxu0 %v1744
        %v2561 = vpop.f32.mrf.mxu0
        %v2562 = vadd.f32 0.0, %v2561
        %2563 = vmatmul.f32.gmra.mxu0 %v1747
        %v2564 = vpop.f32.mrf.mxu0
        %v2565 = vadd.f32 0.0, %v2564
        %2566 = vmatmul.f32.gmra.mxu0 %v2455
        %v2567 = vpop.f32.mrf.mxu0
        %v2568 = vadd.f32 0.0, %v2567
        %2569 = vmatmul.f32.gmra.mxu0 %v2458
        %v2570 = vpop.f32.mrf.mxu0
        %v2571 = vadd.f32 0.0, %v2570
        %2572 = vdwg.mxu0
        %v2573 = vsel %vm753, %v2478, 0.0
        %v2574 = vsel %vm753, %v2481, 0.0
        %v2575 = vadd.f32 %v2573, %v2574
        %v2576 = vsel %vm753, %v2484, 0.0
        %v2577 = vadd.f32 %v2575, %v2576
        %v2578 = vsel %vm753, %v2487, 0.0
        %v2579 = vadd.f32 %v2577, %v2578
        %v2580 = vsel %vm753, %v2490, 0.0
        %v2581 = vadd.f32 %v2579, %v2580
        %v2582 = vsel %vm753, %v2493, 0.0
        %v2583 = vadd.f32 %v2581, %v2582
        %v2584 = vsel %vm753, %v2496, 0.0
        %v2585 = vadd.f32 %v2583, %v2584
        %v2586 = vsel %vm753, %v2499, 0.0
        %v2587 = vadd.f32 %v2585, %v2586
        %v2588 = vsel %vm753, %v2502, 0.0
        %v2589 = vadd.f32 %v2587, %v2588
        %v2590 = vsel %vm753, %v2505, 0.0
        %v2591 = vadd.f32 %v2589, %v2590
        %v2592 = vsel %vm753, %v2508, 0.0
        %v2593 = vadd.f32 %v2591, %v2592
        %v2594 = vsel %vm753, %v2511, 0.0
        %v2595 = vadd.f32 %v2593, %v2594
        %v2596 = vsel %vm753, %v2514, 0.0
        %v2597 = vadd.f32 %v2595, %v2596
        %v2598 = vsel %vm753, %v2517, 0.0
        %v2599 = vadd.f32 %v2597, %v2598
        %v2600 = vsel %vm753, %v2520, 0.0
        %v2601 = vadd.f32 %v2599, %v2600
        %v2602 = vsel %vm753, %v2523, 0.0
        %v2603 = vadd.f32 %v2601, %v2602
        %v2604 = vsel %vm753, %v2526, 0.0
        %v2605 = vadd.f32 %v2603, %v2604
        %v2606 = vsel %vm753, %v2529, 0.0
        %v2607 = vadd.f32 %v2605, %v2606
        %v2608 = vsel %vm753, %v2532, 0.0
        %v2609 = vadd.f32 %v2607, %v2608
        %v2610 = vsel %vm753, %v2535, 0.0
        %v2611 = vadd.f32 %v2609, %v2610
        %v2612 = vsel %vm753, %v2538, 0.0
        %v2613 = vadd.f32 %v2611, %v2612
        %v2614 = vsel %vm753, %v2541, 0.0
        %v2615 = vadd.f32 %v2613, %v2614
        %v2616 = vsel %vm753, %v2544, 0.0
        %v2617 = vadd.f32 %v2615, %v2616
        %v2618 = vsel %vm753, %v2547, 0.0
        %v2619 = vadd.f32 %v2617, %v2618
        %v2620 = vsel %vm753, %v2550, 0.0
        %v2621 = vadd.f32 %v2619, %v2620
        %v2622 = vsel %vm753, %v2553, 0.0
        %v2623 = vadd.f32 %v2621, %v2622
        %v2624 = vsel %vm753, %v2556, 0.0
        %v2625 = vadd.f32 %v2623, %v2624
        %v2626 = vsel %vm753, %v2559, 0.0
        %v2627 = vadd.f32 %v2625, %v2626
        %v2628 = vsel %vm753, %v2562, 0.0
        %v2629 = vadd.f32 %v2627, %v2628
        %v2630 = vsel %vm753, %v2565, 0.0
        %v2631 = vadd.f32 %v2629, %v2630
        %v2632 = vsel %vm753, %v2568, 0.0
        %v2633 = vadd.f32 %v2631, %v2632
        %v2634 = vsel %vm753, %v2571, 0.0
        %v2635 = vadd.f32 %v2633, %v2634
        %v2636 = vrot.slane %v2635, 4
        %v2637 = vadd.f32 %v2635, %v2636
        %v2638 = vrot.slane %v2637, 2
        %v2639 = vadd.f32 %v2637, %v2638
        %v2640 = vrot.slane %v2639, 1
        %v2641 = vadd.f32 %v2639, %v2640
        %v2642 = vmul.f32 %v2641, 0.00390625
        %v2643 = vsub.f32 %v2478, %v2642
        %v2644 = vsub.f32 %v2481, %v2642
        %v2645 = vsub.f32 %v2484, %v2642
        %v2646 = vsub.f32 %v2487, %v2642
        %v2647 = vsub.f32 %v2490, %v2642
        %v2648 = vsub.f32 %v2493, %v2642
        %v2649 = vsub.f32 %v2496, %v2642
        %v2650 = vsub.f32 %v2499, %v2642
        %v2651 = vsub.f32 %v2502, %v2642
        %v2652 = vsub.f32 %v2505, %v2642
        %v2653 = vsub.f32 %v2508, %v2642
        %v2654 = vsub.f32 %v2511, %v2642
        %v2655 = vsub.f32 %v2514, %v2642
        %v2656 = vsub.f32 %v2517, %v2642
        %v2657 = vsub.f32 %v2520, %v2642
        %v2658 = vsub.f32 %v2523, %v2642
        %v2659 = vsub.f32 %v2526, %v2642
        %v2660 = vsub.f32 %v2529, %v2642
        %v2661 = vsub.f32 %v2532, %v2642
        %v2662 = vsub.f32 %v2535, %v2642
        %v2663 = vsub.f32 %v2538, %v2642
        %v2664 = vsub.f32 %v2541, %v2642
        %v2665 = vsub.f32 %v2544, %v2642
        %v2666 = vsub.f32 %v2547, %v2642
        %v2667 = vsub.f32 %v2550, %v2642
        %v2668 = vsub.f32 %v2553, %v2642
        %v2669 = vsub.f32 %v2556, %v2642
        %v2670 = vsub.f32 %v2559, %v2642
        %v2671 = vsub.f32 %v2562, %v2642
        %v2672 = vsub.f32 %v2565, %v2642
        %v2673 = vsub.f32 %v2568, %v2642
        %v2674 = vsub.f32 %v2571, %v2642
        %v2675 = vmul.f32 %v2643, %v2643
        %v2676 = vmul.f32 %v2644, %v2644
        %v2677 = vmul.f32 %v2645, %v2645
        %v2678 = vmul.f32 %v2646, %v2646
        %v2679 = vmul.f32 %v2647, %v2647
        %v2680 = vmul.f32 %v2648, %v2648
        %v2681 = vmul.f32 %v2649, %v2649
        %v2682 = vmul.f32 %v2650, %v2650
        %v2683 = vmul.f32 %v2651, %v2651
        %v2684 = vmul.f32 %v2652, %v2652
        %v2685 = vmul.f32 %v2653, %v2653
        %v2686 = vmul.f32 %v2654, %v2654
        %v2687 = vmul.f32 %v2655, %v2655
        %v2688 = vmul.f32 %v2656, %v2656
        %v2689 = vmul.f32 %v2657, %v2657
        %v2690 = vmul.f32 %v2658, %v2658
        %v2691 = vmul.f32 %v2659, %v2659
        %v2692 = vmul.f32 %v2660, %v2660
        %v2693 = vmul.f32 %v2661, %v2661
        %v2694 = vmul.f32 %v2662, %v2662
        %v2695 = vmul.f32 %v2663, %v2663
        %v2696 = vmul.f32 %v2664, %v2664
        %v2697 = vmul.f32 %v2665, %v2665
        %v2698 = vmul.f32 %v2666, %v2666
        %v2699 = vmul.f32 %v2667, %v2667
        %v2700 = vmul.f32 %v2668, %v2668
        %v2701 = vmul.f32 %v2669, %v2669
        %v2702 = vmul.f32 %v2670, %v2670
        %v2703 = vmul.f32 %v2671, %v2671
        %v2704 = vmul.f32 %v2672, %v2672
        %v2705 = vmul.f32 %v2673, %v2673
        %v2706 = vmul.f32 %v2674, %v2674
        %v2707 = vsel %vm753, %v2675, 0.0
        %v2708 = vsel %vm753, %v2676, 0.0
        %v2709 = vadd.f32 %v2707, %v2708
        %v2710 = vsel %vm753, %v2677, 0.0
        %v2711 = vadd.f32 %v2709, %v2710
        %v2712 = vsel %vm753, %v2678, 0.0
        %v2713 = vadd.f32 %v2711, %v2712
        %v2714 = vsel %vm753, %v2679, 0.0
        %v2715 = vadd.f32 %v2713, %v2714
        %v2716 = vsel %vm753, %v2680, 0.0
        %v2717 = vadd.f32 %v2715, %v2716
        %v2718 = vsel %vm753, %v2681, 0.0
        %v2719 = vadd.f32 %v2717, %v2718
        %v2720 = vsel %vm753, %v2682, 0.0
        %v2721 = vadd.f32 %v2719, %v2720
        %v2722 = vsel %vm753, %v2683, 0.0
        %v2723 = vadd.f32 %v2721, %v2722
        %v2724 = vsel %vm753, %v2684, 0.0
        %v2725 = vadd.f32 %v2723, %v2724
        %v2726 = vsel %vm753, %v2685, 0.0
        %v2727 = vadd.f32 %v2725, %v2726
        %v2728 = vsel %vm753, %v2686, 0.0
        %v2729 = vadd.f32 %v2727, %v2728
        %v2730 = vsel %vm753, %v2687, 0.0
        %v2731 = vadd.f32 %v2729, %v2730
        %v2732 = vsel %vm753, %v2688, 0.0
        %v2733 = vadd.f32 %v2731, %v2732
        %v2734 = vsel %vm753, %v2689, 0.0
        %v2735 = vadd.f32 %v2733, %v2734
        %v2736 = vsel %vm753, %v2690, 0.0
        %v2737 = vadd.f32 %v2735, %v2736
        %v2738 = vsel %vm753, %v2691, 0.0
        %v2739 = vadd.f32 %v2737, %v2738
        %v2740 = vsel %vm753, %v2692, 0.0
        %v2741 = vadd.f32 %v2739, %v2740
        %v2742 = vsel %vm753, %v2693, 0.0
        %v2743 = vadd.f32 %v2741, %v2742
        %v2744 = vsel %vm753, %v2694, 0.0
        %v2745 = vadd.f32 %v2743, %v2744
        %v2746 = vsel %vm753, %v2695, 0.0
        %v2747 = vadd.f32 %v2745, %v2746
        %v2748 = vsel %vm753, %v2696, 0.0
        %v2749 = vadd.f32 %v2747, %v2748
        %v2750 = vsel %vm753, %v2697, 0.0
        %v2751 = vadd.f32 %v2749, %v2750
        %v2752 = vsel %vm753, %v2698, 0.0
        %v2753 = vadd.f32 %v2751, %v2752
        %v2754 = vsel %vm753, %v2699, 0.0
        %v2755 = vadd.f32 %v2753, %v2754
        %v2756 = vsel %vm753, %v2700, 0.0
        %v2757 = vadd.f32 %v2755, %v2756
        %v2758 = vsel %vm753, %v2701, 0.0
        %v2759 = vadd.f32 %v2757, %v2758
        %v2760 = vsel %vm753, %v2702, 0.0
        %v2761 = vadd.f32 %v2759, %v2760
        %v2762 = vsel %vm753, %v2703, 0.0
        %v2763 = vadd.f32 %v2761, %v2762
        %v2764 = vsel %vm753, %v2704, 0.0
        %v2765 = vadd.f32 %v2763, %v2764
        %v2766 = vsel %vm753, %v2705, 0.0
        %v2767 = vadd.f32 %v2765, %v2766
        %v2768 = vsel %vm753, %v2706, 0.0
        %v2769 = vadd.f32 %v2767, %v2768
        %v2770 = vrot.slane %v2769, 4
        %v2771 = vadd.f32 %v2769, %v2770
        %v2772 = vrot.slane %v2771, 2
        %v2773 = vadd.f32 %v2771, %v2772
        %v2774 = vrot.slane %v2773, 1
        %v2775 = vadd.f32 %v2773, %v2774
        %v2776 = vmul.f32 %v2426, 0.0013020834
        %v2777 = vsub.f32 %v2642, %v2776
        %v2778 = vadd.f32 %v2425, %v2775
        %v2779 = vmul.f32 %v2777, %v2777
        %v2780 = vmul.f32 %v2779, 192.0
        %v2781 = vadd.f32 %v2778, %v2780
        %v2782 = vadd.f32 %v2426, %v2641
        %vm2783 = vcmask 1040384
        %v2784 = vsel %vm2783, %v2782, %v2781
        %vm2785 = vcmask 58368
        %2786 = vst.msk [vmem:[%s215] sm:$0x3] %vm2785, %v2784
        %s2787 = sand.u32 %s116, 1
        %s2788 = scalar_lea.sflag [#allocation3], %s2787
        %s2789 = sand.u32 %s116, 1
        %s2790 = smul.addr %s2789, 2
        %s2791 = scalar_lea.vmem [#allocation2], %s2790
        // Predicated region
        $region33: #{tpu_custom_call.1} parent=31 // pred_check
          %p2792 = pneg %p126
        $region34: #{tpu_custom_call.1} parent=31 // pred_check_branch
          %2794 = sbr.rel (%p2792) target = $region36
        $region35: #{tpu_custom_call.1} parent=31 // pred_region
          %2796 = vsyncadd %s2788, 0
          %s2797 = sadd.s32 %s22, %s21
          %s2798 = smul.addr %s2797, 2
          %s2799 = scalar_lea.hbm %s3, %s2798
          %s2801 = sshll.u32 %s2791, 4
          %s2802 = int_to_ptr.vmem [resolvable:$true] %s2801
          %s2803 = sshll.u32 %s2799, 4
          %s2804 = int_to_ptr.hbm [resolvable:$true] %s2803
          %2806 = dma.vmem_to_hbm [thread:$0]  %s2802, 32, %s2804, %s2788
        $region36: #{tpu_custom_call.1} parent=31 // pred_fallthru
          _
      $region32: #{tpu_custom_call.1} parent=5 // pred_fallthru
        _
      %p2807 = scmp.le.s32.totalorder 2, %s12
      // Predicated region
      $region37: #{tpu_custom_call.1} parent=5 // pred_check
        %p2808 = pneg %p2807
      $region38: #{tpu_custom_call.1} parent=5 // pred_check_branch
        %2810 = sbr.rel (%p2808) target = $region40
      $region39: #{tpu_custom_call.1} parent=5 // pred_region
        %s2811 = ssub.s32 %s12, 2
        // Predicated region
        $region41: #{tpu_custom_call.1} parent=39 // pred_check
          %p2812 = pneg %p132
        $region42: #{tpu_custom_call.1} parent=39 // pred_check_branch
          %2814 = sbr.rel (%p2812) target = $region44
        $region43: #{tpu_custom_call.1} parent=39 // pred_region
          %s2815 = sand.u32 %s117, 1
          %s2816 = scalar_lea.sflag [#allocation3], %s2815
          %s2817 = sand.u32 %s117, 1
          %s2818 = smul.addr %s2817, 2
          %s2819 = scalar_lea.vmem [#allocation2], %s2818
          %2821 = dma.done %s2816, 32
        $region44: #{tpu_custom_call.1} parent=39 // pred_fallthru
          _
      $region40: #{tpu_custom_call.1} parent=5 // pred_fallthru
        _
    $region6: #{tpu_custom_call.1} parent=1 // loop_footer
      %s16 = sadd.s32 1, %s12
    $region7: #{tpu_custom_call.1} parent=1 // loop_footer_branch
      %11 = sbr.rel target = $region3
    $region8: #{tpu_custom_call.1} parent=1 // loop_exit
      _
    %2822 = vsyncpa [#allocation3], 1
    %s2823 = scalar_lea.sflag [#allocation3], 1
    %2824 = vsyncpa %s2823, 1

</llo_original>
